<compile_context>
chip_gen: v7x
topology: tpu7x:2x2x1
jax: 0.10.0
libtpu: 0.0.40
codegen_flags: <defaults>
</compile_context>

<pallas_src>
import functools

import jax
import jax.numpy as jnp
from jax.experimental import pallas as pl
from jax.experimental.pallas import tpu as pltpu

# ---- model hyper-parameters (match the PyTorch __init__ defaults) ----
N_STEPS = 16
INPUT_DIM = 6
NUM_UNITS = 128
DEPTH = 4
AUG = NUM_UNITS + N_STEPS        # 144 = hidden units + one-hot passthrough lanes

MAX_TILE_B = 512                 # cap on rows per grid step
BATCH = 256                      # example batch


def _round_up(n, m):
    return ((n + m - 1) // m) * m


def _choose_tile_b(batch):
    """Pick the batch tile: a single grid step when possible (per-step overhead
    ~0.35us dwarfs the sub-us compute here), and an even number of steps when
    the device exposes >1 TensorCore so the "parallel" axis uses both (v7x)."""
    num_cores = getattr(jax.devices()[0], "num_cores", 1) or 1
    b8 = _round_up(max(int(batch), 1), 8)
    if num_cores >= 2 and b8 >= 16 and (b8 // 2) % 8 == 0:
        return min(MAX_TILE_B, b8 // 2)
    return min(MAX_TILE_B, b8)


def _mlp_diffusion_kernel(x_ref, t_ref, w0x_ref, w0t_ref, w_hid_ref, w_out_ref,
                          o_ref):
    """One batch tile of the full forward pass.

    x_ref:     (TB, INPUT_DIM)            f32
    t_ref:     (TB, 1)                    int32 timestep indices in [0, N_STEPS)
    w0x_ref:   (INPUT_DIM, AUG)           bf16  [W_in | 0]
    w0t_ref:   (N_STEPS, AUG)             bf16  [E_0 + b_0 | I_16]
    w_hid_ref: (DEPTH-1, AUG, AUG)        bf16  [[W_i, 0], [E_i + b_i, I_16]]
    w_out_ref: (AUG, INPUT_DIM)           bf16  [W_out ; b_out replicated]
    o_ref:     (TB, INPUT_DIM)            f32
    """
    tb = x_ref.shape[0]

    # One-hot timestep encoding, built directly in bf16 (exact {0,1}).
    steps = jax.lax.broadcasted_iota(jnp.int32, (tb, N_STEPS), 1)
    onehot = (t_ref[...] == steps).astype(jnp.bfloat16)            # (TB, 16)

    # Layer 0: x @ [W_in|0] + onehot @ [E_0+b_0|I]  -> (TB, AUG), then ReLU.
    # The identity block copies the one-hot into lanes 128:144 of h, where it
    # survives ReLU and every subsequent augmented GEMM untouched.
    h = jnp.dot(x_ref[...].astype(jnp.bfloat16), w0x_ref[...],
                preferred_element_type=jnp.float32)
    h = h + jnp.dot(onehot, w0t_ref[...], preferred_element_type=jnp.float32)
    h = jnp.maximum(h, 0.0)

    # Hidden layers: single fused GEMM each (Linear + t-embedding + bias).
    for i in range(DEPTH - 1):
        h = jnp.maximum(
            jnp.dot(h.astype(jnp.bfloat16), w_hid_ref[i],
                    preferred_element_type=jnp.float32), 0.0)

    # Output projection; b_out is folded into the one-hot rows.  Narrow store.
    o_ref[...] = jnp.dot(h.astype(jnp.bfloat16), w_out_ref[...],
                         preferred_element_type=jnp.float32)


@functools.partial(jax.jit, static_argnames=("tile_b",))
def _forward_jit(x, t, w0x, w0t, w_hid, w_out, *, tile_b):
    B = x.shape[0]
    num_tiles = pl.cdiv(B, tile_b)
    Bp = num_tiles * tile_b

    t2 = jnp.reshape(t, (B, 1)).astype(jnp.int32)   # no-op if already (B,1) i32
    xx = x
    if Bp != B:                                     # pad only when misaligned
        xx = jnp.pad(xx, ((0, Bp - B), (0, 0)))
        t2 = jnp.pad(t2, ((0, Bp - B), (0, 0)))

    out = pl.pallas_call(
        _mlp_diffusion_kernel,
        out_shape=jax.ShapeDtypeStruct((Bp, INPUT_DIM), jnp.float32),
        grid=(num_tiles,),
        in_specs=[
            # batch-tiled tensors
            pl.BlockSpec((tile_b, INPUT_DIM), lambda i: (i, 0)),
            pl.BlockSpec((tile_b, 1), lambda i: (i, 0)),
            # weights: constant index_maps -> DMA'd once, VMEM-resident
            pl.BlockSpec((INPUT_DIM, AUG), lambda i: (0, 0)),
            pl.BlockSpec((N_STEPS, AUG), lambda i: (0, 0)),
            pl.BlockSpec((DEPTH - 1, AUG, AUG), lambda i: (0, 0, 0)),
            pl.BlockSpec((AUG, INPUT_DIM), lambda i: (0, 0)),
        ],
        out_specs=pl.BlockSpec((tile_b, INPUT_DIM), lambda i: (i, 0)),
        compiler_params=pltpu.CompilerParams(
            dimension_semantics=("parallel",)),     # shards across TCs on v7x
    )(xx, t2, w0x, w0t, w_hid, w_out)

    if Bp != B:                                     # slice only when padded
        out = out[:B]
    return out


def mlp_diffusion_forward(x, t, params, tile_b=None):
    """x: (B, INPUT_DIM) f32, t: (B,) or (B,1) int32 in [0, N_STEPS)."""
    if tile_b is None:
        tile_b = _choose_tile_b(x.shape[0])
    return _forward_jit(x, t, params["w0x"], params["w0t"], params["w_hid"],
                        params["w_out"], tile_b=tile_b)


def reference_forward(x, t, raw):
    """Pure-JAX reference with PyTorch forward semantics, mirroring the
    kernel's bf16 weight/operand rounding (f32 accumulation)."""
    q = lambda v: v.astype(jnp.bfloat16).astype(jnp.float32)

    b_layers = jnp.concatenate([raw["b0"][None], raw["b_hid"]], axis=0)
    emb = q(raw["embed"] + b_layers[:, None, :])        # (DEPTH, N_STEPS, U)
    temb = emb[:, t, :]                                 # (DEPTH, B, U)

    h = jnp.maximum(q(x) @ q(raw["w_in"]) + temb[0], 0.0)
    for i in range(1, DEPTH):
        h = jnp.maximum(q(h) @ q(raw["w_hid"][i - 1]) + temb[i], 0.0)
    return q(h) @ q(raw["w_out"]) + q(raw["b_out"])


def init_params(key):
    """Deterministic synthetic parameters (PyTorch-like uniform fan-in init),
    packed for the kernel: hidden biases folded into the embedding tables,
    everything fused into augmented bf16 matrices with a one-hot passthrough
    block; raw f32 params returned separately for the reference."""
    keys = jax.random.split(key, 2 * DEPTH + 4)
    k = iter(keys)

    def lin_w(kk, fi, fo):
        bound = 1.0 / (fi ** 0.5)
        return jax.random.uniform(kk, (fi, fo), jnp.float32, -bound, bound)

    def lin_b(kk, fi, fo):
        bound = 1.0 / (fi ** 0.5)
        return jax.random.uniform(kk, (fo,), jnp.float32, -bound, bound)

    w_in = lin_w(next(k), INPUT_DIM, NUM_UNITS)
    b0 = lin_b(next(k), INPUT_DIM, NUM_UNITS)
    w_hid = jnp.stack([lin_w(next(k), NUM_UNITS, NUM_UNITS)
                       for _ in range(DEPTH - 1)])
    b_hid = jnp.stack([lin_b(next(k), NUM_UNITS, NUM_UNITS)
                       for _ in range(DEPTH - 1)])
    w_out = lin_w(next(k), NUM_UNITS, INPUT_DIM)
    b_out = lin_b(next(k), NUM_UNITS, INPUT_DIM)
    embed = jax.random.normal(next(k), (DEPTH, N_STEPS, NUM_UNITS), jnp.float32)

    eye = jnp.eye(N_STEPS, dtype=jnp.float32)

    # Layer 0 split: [W_in | 0] and [E_0 + b_0 | I].
    w0x = jnp.zeros((INPUT_DIM, AUG), jnp.float32).at[:, :NUM_UNITS].set(w_in)
    w0t = jnp.concatenate([embed[0] + b0[None, :], eye], axis=-1)

    # Hidden layers: augmented (AUG, AUG) with embedding/bias rows + identity.
    whid_aug = []
    for i in range(DEPTH - 1):
        wa = jnp.zeros((AUG, AUG), jnp.float32)
        wa = wa.at[:NUM_UNITS, :NUM_UNITS].set(w_hid[i])
        wa = wa.at[NUM_UNITS:, :NUM_UNITS].set(embed[i + 1] + b_hid[i][None, :])
        wa = wa.at[NUM_UNITS:, NUM_UNITS:].set(eye)
        whid_aug.append(wa)
    whid_aug = jnp.stack(whid_aug)

    # Output projection with b_out replicated over the one-hot rows
    # (one-hot sums to 1, so exactly one copy of b_out is picked up).
    wout_aug = jnp.concatenate(
        [w_out, jnp.broadcast_to(b_out[None, :], (N_STEPS, INPUT_DIM))], axis=0)

    packed = {
        "w0x": w0x.astype(jnp.bfloat16),
        "w0t": w0t.astype(jnp.bfloat16),
        "w_hid": whid_aug.astype(jnp.bfloat16),
        "w_out": wout_aug.astype(jnp.bfloat16),
    }
    raw = {"w_in": w_in, "b0": b0, "w_hid": w_hid, "b_hid": b_hid,
           "w_out": w_out, "b_out": b_out, "embed": embed}
    return packed, raw


if __name__ == "__main__":
    root = jax.random.PRNGKey(0)
    k_params, k_x, k_t = jax.random.split(root, 3)

    params, raw = init_params(k_params)
    x = jax.random.normal(k_x, (BATCH, INPUT_DIM), jnp.float32)
    t = jax.random.randint(k_t, (BATCH,), 0, N_STEPS, jnp.int32)
    t2 = t.reshape(BATCH, 1)        # pre-shaped (B,1) int32: no wrapper reshape

    out = mlp_diffusion_forward(x, t2, params)
    out = jax.block_until_ready(out)

    ref = reference_forward(x, t, raw)
    assert out.shape == (BATCH, INPUT_DIM)
    assert jnp.allclose(out, ref, atol=2e-3, rtol=2e-3), "mismatch vs reference"

    print("KERNEL_OK")
</pallas_src>

<mosaic_0001>
module attributes {stable_mosaic.version = 11 : i64} {
  func.func @_mlp_diffusion_kernel(%arg0: i32, %arg1: memref<256x6xf32, #tpu.memory_space<vmem>>, %arg2: memref<256x1xi32, #tpu.memory_space<vmem>>, %arg3: memref<6x144xbf16, #tpu.memory_space<vmem>>, %arg4: memref<16x144xbf16, #tpu.memory_space<vmem>>, %arg5: memref<3x144x144xbf16, #tpu.memory_space<vmem>>, %arg6: memref<144x6xbf16, #tpu.memory_space<vmem>>, %arg7: memref<256x6xf32, #tpu.memory_space<vmem>>) attributes {dimension_semantics = [#tpu.dimension_semantics<parallel>], iteration_bounds = array<i64: 1>, scalar_prefetch = 0 : i64, scratch_operands = 0 : i64, tpu.core_type = #tpu.core_type<tc>, window_params = [{transform_indices = @transform_0, window_bounds = array<i64: 256, 6>}, {transform_indices = @transform_1, window_bounds = array<i64: 256, 1>}, {pipeline_mode = #tpu.pipeline_mode<synchronous>, transform_indices = @transform_2, window_bounds = array<i64: 6, 144>}, {pipeline_mode = #tpu.pipeline_mode<synchronous>, transform_indices = @transform_3, window_bounds = array<i64: 16, 144>}, {pipeline_mode = #tpu.pipeline_mode<synchronous>, transform_indices = @transform_4, window_bounds = array<i64: 3, 144, 144>}, {pipeline_mode = #tpu.pipeline_mode<synchronous>, transform_indices = @transform_5, window_bounds = array<i64: 144, 6>}, {transform_indices = @transform_6, window_bounds = array<i64: 256, 6>}]} {
    %0 = tpu.iota {dimensions = array<i32: 1>} : vector<256x16xi32>
    %c0 = arith.constant 0 : index
    %c0_0 = arith.constant 0 : index
    %1 = vector.load %arg2[%c0, %c0_0] : memref<256x1xi32, #tpu.memory_space<vmem>>, vector<256x1xi32>
    %2 = vector.broadcast %1 : vector<256x1xi32> to vector<256x16xi32>
    %3 = arith.cmpi eq, %2, %0 : vector<256x16xi32>
    %4 = arith.extui %3 : vector<256x16xi1> to vector<256x16xi32>
    %5 = arith.sitofp %4 : vector<256x16xi32> to vector<256x16xf32>
    %6 = arith.truncf %5 : vector<256x16xf32> to vector<256x16xbf16>
    %c0_1 = arith.constant 0 : index
    %c0_2 = arith.constant 0 : index
    %7 = vector.load %arg1[%c0_1, %c0_2] : memref<256x6xf32, #tpu.memory_space<vmem>>, vector<256x6xf32>
    %8 = arith.truncf %7 : vector<256x6xf32> to vector<256x6xbf16>
    %c0_3 = arith.constant 0 : index
    %c0_4 = arith.constant 0 : index
    %9 = vector.load %arg3[%c0_3, %c0_4] : memref<6x144xbf16, #tpu.memory_space<vmem>>, vector<6x144xbf16>
    %cst = arith.constant dense<0.000000e+00> : vector<256x144xf32>
    %10 = tpu.matmul %8, %9, %cst {dimension_numbers = #tpu.dot_dimension_numbers<[1], [0], [0], [1], [0, 0, 1, 1], [], []>} : vector<256x6xbf16>, vector<6x144xbf16>, vector<256x144xf32> -> vector<256x144xf32>
    %c0_5 = arith.constant 0 : index
    %c0_6 = arith.constant 0 : index
    %11 = vector.load %arg4[%c0_5, %c0_6] : memref<16x144xbf16, #tpu.memory_space<vmem>>, vector<16x144xbf16>
    %cst_7 = arith.constant dense<0.000000e+00> : vector<256x144xf32>
    %12 = tpu.matmul %6, %11, %cst_7 {dimension_numbers = #tpu.dot_dimension_numbers<[1], [0], [0], [1], [0, 0, 1, 1], [], []>} : vector<256x16xbf16>, vector<16x144xbf16>, vector<256x144xf32> -> vector<256x144xf32>
    %13 = arith.addf %10, %12 : vector<256x144xf32>
    %cst_8 = arith.constant 0.000000e+00 : f32
    %14 = vector.broadcast %cst_8 : f32 to vector<256x144xf32>
    %15 = arith.maximumf %13, %14 : vector<256x144xf32>
    %16 = arith.truncf %15 : vector<256x144xf32> to vector<256x144xbf16>
    %c0_9 = arith.constant 0 : index
    %c0_10 = arith.constant 0 : index
    %c0_11 = arith.constant 0 : index
    %17 = vector.load %arg5[%c0_9, %c0_10, %c0_11] : memref<3x144x144xbf16, #tpu.memory_space<vmem>>, vector<1x144x144xbf16>
    %18 = vector.shape_cast %17 : vector<1x144x144xbf16> to vector<144x144xbf16>
    %cst_12 = arith.constant dense<0.000000e+00> : vector<256x144xf32>
    %19 = tpu.matmul %16, %18, %cst_12 {dimension_numbers = #tpu.dot_dimension_numbers<[1], [0], [0], [1], [0, 0, 1, 1], [], []>} : vector<256x144xbf16>, vector<144x144xbf16>, vector<256x144xf32> -> vector<256x144xf32>
    %cst_13 = arith.constant 0.000000e+00 : f32
    %20 = vector.broadcast %cst_13 : f32 to vector<256x144xf32>
    %21 = arith.maximumf %19, %20 : vector<256x144xf32>
    %22 = arith.truncf %21 : vector<256x144xf32> to vector<256x144xbf16>
    %c1 = arith.constant 1 : index
    %c0_14 = arith.constant 0 : index
    %c0_15 = arith.constant 0 : index
    %23 = vector.load %arg5[%c1, %c0_14, %c0_15] : memref<3x144x144xbf16, #tpu.memory_space<vmem>>, vector<1x144x144xbf16>
    %24 = vector.shape_cast %23 : vector<1x144x144xbf16> to vector<144x144xbf16>
    %cst_16 = arith.constant dense<0.000000e+00> : vector<256x144xf32>
    %25 = tpu.matmul %22, %24, %cst_16 {dimension_numbers = #tpu.dot_dimension_numbers<[1], [0], [0], [1], [0, 0, 1, 1], [], []>} : vector<256x144xbf16>, vector<144x144xbf16>, vector<256x144xf32> -> vector<256x144xf32>
    %cst_17 = arith.constant 0.000000e+00 : f32
    %26 = vector.broadcast %cst_17 : f32 to vector<256x144xf32>
    %27 = arith.maximumf %25, %26 : vector<256x144xf32>
    %28 = arith.truncf %27 : vector<256x144xf32> to vector<256x144xbf16>
    %c2 = arith.constant 2 : index
    %c0_18 = arith.constant 0 : index
    %c0_19 = arith.constant 0 : index
    %29 = vector.load %arg5[%c2, %c0_18, %c0_19] : memref<3x144x144xbf16, #tpu.memory_space<vmem>>, vector<1x144x144xbf16>
    %30 = vector.shape_cast %29 : vector<1x144x144xbf16> to vector<144x144xbf16>
    %cst_20 = arith.constant dense<0.000000e+00> : vector<256x144xf32>
    %31 = tpu.matmul %28, %30, %cst_20 {dimension_numbers = #tpu.dot_dimension_numbers<[1], [0], [0], [1], [0, 0, 1, 1], [], []>} : vector<256x144xbf16>, vector<144x144xbf16>, vector<256x144xf32> -> vector<256x144xf32>
    %cst_21 = arith.constant 0.000000e+00 : f32
    %32 = vector.broadcast %cst_21 : f32 to vector<256x144xf32>
    %33 = arith.maximumf %31, %32 : vector<256x144xf32>
    %34 = arith.truncf %33 : vector<256x144xf32> to vector<256x144xbf16>
    %c0_22 = arith.constant 0 : index
    %c0_23 = arith.constant 0 : index
    %35 = vector.load %arg6[%c0_22, %c0_23] : memref<144x6xbf16, #tpu.memory_space<vmem>>, vector<144x6xbf16>
    %cst_24 = arith.constant dense<0.000000e+00> : vector<256x6xf32>
    %36 = tpu.matmul %34, %35, %cst_24 {dimension_numbers = #tpu.dot_dimension_numbers<[1], [0], [0], [1], [0, 0, 1, 1], [], []>} : vector<256x144xbf16>, vector<144x6xbf16>, vector<256x6xf32> -> vector<256x6xf32>
    %c0_25 = arith.constant 0 : index
    %c0_26 = arith.constant 0 : index
    %37 = vector.load %arg7[%c0_25, %c0_26] : memref<256x6xf32, #tpu.memory_space<vmem>>, vector<256x6xf32>
    tpu.vector_store %arg7[%c0_25, %c0_26], %36 {strides = array<i32>} : memref<256x6xf32, #tpu.memory_space<vmem>>, vector<256x6xf32>,
    return
  }
  func.func @transform_0(%arg0: i32) -> (i32, i32) {
    %c0_i32 = arith.constant 0 : i32
    %c0_i32_0 = arith.constant 0 : i32
    return %arg0, %c0_i32 : i32, i32
  }
  func.func @transform_1(%arg0: i32) -> (i32, i32) {
    %c0_i32 = arith.constant 0 : i32
    %c0_i32_0 = arith.constant 0 : i32
    return %arg0, %c0_i32 : i32, i32
  }
  func.func @transform_2(%arg0: i32) -> (i32, i32) {
    %c0_i32 = arith.constant 0 : i32
    %c0_i32_0 = arith.constant 0 : i32
    %c0_i32_1 = arith.constant 0 : i32
    return %c0_i32, %c0_i32_0 : i32, i32
  }
  func.func @transform_3(%arg0: i32) -> (i32, i32) {
    %c0_i32 = arith.constant 0 : i32
    %c0_i32_0 = arith.constant 0 : i32
    %c0_i32_1 = arith.constant 0 : i32
    return %c0_i32, %c0_i32_0 : i32, i32
  }
  func.func @transform_4(%arg0: i32) -> (i32, i32, i32) {
    %c0_i32 = arith.constant 0 : i32
    %c0_i32_0 = arith.constant 0 : i32
    %c0_i32_1 = arith.constant 0 : i32
    %c0_i32_2 = arith.constant 0 : i32
    return %c0_i32, %c0_i32_0, %c0_i32_1 : i32, i32, i32
  }
  func.func @transform_5(%arg0: i32) -> (i32, i32) {
    %c0_i32 = arith.constant 0 : i32
    %c0_i32_0 = arith.constant 0 : i32
    %c0_i32_1 = arith.constant 0 : i32
    return %c0_i32, %c0_i32_0 : i32, i32
  }
  func.func @transform_6(%arg0: i32) -> (i32, i32) {
    %c0_i32 = arith.constant 0 : i32
    %c0_i32_0 = arith.constant 0 : i32
    return %arg0, %c0_i32 : i32, i32
  }
}

</mosaic_0001>

<llo_original>
// kernel: _forward_jit.1
$region0: #{_forward_jit.1}
  #allocation0 [shape = 'u32[]', space=smem, size = 0x4, offset = 0x4, fixed_abs, tag = 'smem constant byte address 0x4 - core index']
  #allocation1 [shape = 'u32[144,128]{1,0:T(1,128)}', space=vmem, size = 0x12000, scoped, tag = 'internal scratch']
  %s0 = inlined_call_operand.vmem [shape: f32[256,6], index: 0, kind: input, shape index: {}]
  %s1 = inlined_call_operand.vmem [shape: s32[256,1], index: 1, kind: input, shape index: {}]
  %s2 = inlined_call_operand.vmem [shape: bf16[6,144], index: 2, kind: input, shape index: {}]
  %s3 = inlined_call_operand.vmem [shape: bf16[16,144], index: 3, kind: input, shape index: {}]
  %s4 = inlined_call_operand.vmem [shape: bf16[3,144,144], index: 4, kind: input, shape index: {}]
  %s5 = inlined_call_operand.vmem [shape: bf16[144,6], index: 5, kind: input, shape index: {}]
  %s6 = inlined_call_operand.vmem [shape: f32[256,6], index: 6, kind: output, shape index: {}]
  %s7 = sld [smem:[#allocation0]]
  $region34: #{_forward_jit.1} parent=0
    _
  %s9 = ssub.s32 1, %s7
  %s10 = scalar_select 0, %s9, %s7
  // Predicated region
  $region2: #{_forward_jit.1} parent=0 // pred_check
    _
  $region3: #{_forward_jit.1} parent=0 // pred_check_branch
    %12 = sbr.rel (0) target = $region5
  $region4: #{_forward_jit.1} parent=0 // pred_region
    _
  $region5: #{_forward_jit.1} parent=0 // pred_fallthru
    _
  // Predicated region
  $region6: #{_forward_jit.1} parent=0 // pred_check
    _
  $region7: #{_forward_jit.1} parent=0 // pred_check_branch
    %14 = sbr.rel (0) target = $region9
  $region8: #{_forward_jit.1} parent=0 // pred_region
    _
  $region9: #{_forward_jit.1} parent=0 // pred_fallthru
    _
  // Predicated region
  $region10: #{_forward_jit.1} parent=0 // pred_check
    _
  $region11: #{_forward_jit.1} parent=0 // pred_check_branch
    %16 = sbr.rel (0) target = $region13
  $region12: #{_forward_jit.1} parent=0 // pred_region
    _
  $region13: #{_forward_jit.1} parent=0 // pred_fallthru
    _
  // Predicated region
  $region14: #{_forward_jit.1} parent=0 // pred_check
    _
  $region15: #{_forward_jit.1} parent=0 // pred_check_branch
    %18 = sbr.rel (0) target = $region17
  $region16: #{_forward_jit.1} parent=0 // pred_region
    _
  $region17: #{_forward_jit.1} parent=0 // pred_fallthru
    _
  // Predicated region
  $region18: #{_forward_jit.1} parent=0 // pred_check
    _
  $region19: #{_forward_jit.1} parent=0 // pred_check_branch
    %20 = sbr.rel (0) target = $region21
  $region20: #{_forward_jit.1} parent=0 // pred_region
    _
  $region21: #{_forward_jit.1} parent=0 // pred_fallthru
    _
  // Predicated region
  $region22: #{_forward_jit.1} parent=0 // pred_check
    _
  $region23: #{_forward_jit.1} parent=0 // pred_check_branch
    %22 = sbr.rel (0) target = $region25
  $region24: #{_forward_jit.1} parent=0 // pred_region
    _
  $region25: #{_forward_jit.1} parent=0 // pred_fallthru
    _
  %v24 = vlaneseq
  %v25 = vand.u32 %v24, 127
  %v26 = vld [vmem:[%s1] sm:$0xff]
  %v27 = vld [vmem:[%s1 + $0x8] sm:$0xff]
  %v28 = vld [vmem:[%s1 + $0x10] sm:$0xff]
  %v29 = vld [vmem:[%s1 + $0x18] sm:$0xff]
  %v30 = vld [vmem:[%s1 + $0x20] sm:$0xff]
  %v31 = vld [vmem:[%s1 + $0x28] sm:$0xff]
  %v32 = vld [vmem:[%s1 + $0x30] sm:$0xff]
  %v33 = vld [vmem:[%s1 + $0x38] sm:$0xff]
  %v34 = vld [vmem:[%s1 + $0x40] sm:$0xff]
  %v35 = vld [vmem:[%s1 + $0x48] sm:$0xff]
  %v36 = vld [vmem:[%s1 + $0x50] sm:$0xff]
  %v37 = vld [vmem:[%s1 + $0x58] sm:$0xff]
  %v38 = vld [vmem:[%s1 + $0x60] sm:$0xff]
  %v39 = vld [vmem:[%s1 + $0x68] sm:$0xff]
  %v40 = vld [vmem:[%s1 + $0x70] sm:$0xff]
  %v41 = vld [vmem:[%s1 + $0x78] sm:$0xff]
  %v42 = vld [vmem:[%s1 + $0x80] sm:$0xff]
  %v43 = vld [vmem:[%s1 + $0x88] sm:$0xff]
  %v44 = vld [vmem:[%s1 + $0x90] sm:$0xff]
  %v45 = vld [vmem:[%s1 + $0x98] sm:$0xff]
  %v46 = vld [vmem:[%s1 + $0xa0] sm:$0xff]
  %v47 = vld [vmem:[%s1 + $0xa8] sm:$0xff]
  %v48 = vld [vmem:[%s1 + $0xb0] sm:$0xff]
  %v49 = vld [vmem:[%s1 + $0xb8] sm:$0xff]
  %v50 = vld [vmem:[%s1 + $0xc0] sm:$0xff]
  %v51 = vld [vmem:[%s1 + $0xc8] sm:$0xff]
  %v52 = vld [vmem:[%s1 + $0xd0] sm:$0xff]
  %v53 = vld [vmem:[%s1 + $0xd8] sm:$0xff]
  %v54 = vld [vmem:[%s1 + $0xe0] sm:$0xff]
  %v55 = vld [vmem:[%s1 + $0xe8] sm:$0xff]
  %v56 = vld [vmem:[%s1 + $0xf0] sm:$0xff]
  %v57 = vld [vmem:[%s1 + $0xf8] sm:$0xff]
  %58 = vset.pattern.permute.xlu0 0
  %59 = vperm.xlu0 %58, %v26
  %v60 = vpop.permute.xlu0 %59
  %61 = vset.pattern.permute.xlu0 0
  %62 = vperm.xlu0 %61, %v27
  %v63 = vpop.permute.xlu0 %62
  %64 = vset.pattern.permute.xlu0 0
  %65 = vperm.xlu0 %64, %v28
  %v66 = vpop.permute.xlu0 %65
  %67 = vset.pattern.permute.xlu0 0
  %68 = vperm.xlu0 %67, %v29
  %v69 = vpop.permute.xlu0 %68
  %70 = vset.pattern.permute.xlu0 0
  %71 = vperm.xlu0 %70, %v30
  %v72 = vpop.permute.xlu0 %71
  %73 = vset.pattern.permute.xlu0 0
  %74 = vperm.xlu0 %73, %v31
  %v75 = vpop.permute.xlu0 %74
  %76 = vset.pattern.permute.xlu0 0
  %77 = vperm.xlu0 %76, %v32
  %v78 = vpop.permute.xlu0 %77
  %79 = vset.pattern.permute.xlu0 0
  %80 = vperm.xlu0 %79, %v33
  %v81 = vpop.permute.xlu0 %80
  %82 = vset.pattern.permute.xlu0 0
  %83 = vperm.xlu0 %82, %v34
  %v84 = vpop.permute.xlu0 %83
  %85 = vset.pattern.permute.xlu0 0
  %86 = vperm.xlu0 %85, %v35
  %v87 = vpop.permute.xlu0 %86
  %88 = vset.pattern.permute.xlu0 0
  %89 = vperm.xlu0 %88, %v36
  %v90 = vpop.permute.xlu0 %89
  %91 = vset.pattern.permute.xlu0 0
  %92 = vperm.xlu0 %91, %v37
  %v93 = vpop.permute.xlu0 %92
  %94 = vset.pattern.permute.xlu0 0
  %95 = vperm.xlu0 %94, %v38
  %v96 = vpop.permute.xlu0 %95
  %97 = vset.pattern.permute.xlu0 0
  %98 = vperm.xlu0 %97, %v39
  %v99 = vpop.permute.xlu0 %98
  %100 = vset.pattern.permute.xlu0 0
  %101 = vperm.xlu0 %100, %v40
  %v102 = vpop.permute.xlu0 %101
  %103 = vset.pattern.permute.xlu0 0
  %104 = vperm.xlu0 %103, %v41
  %v105 = vpop.permute.xlu0 %104
  %106 = vset.pattern.permute.xlu0 0
  %107 = vperm.xlu0 %106, %v42
  %v108 = vpop.permute.xlu0 %107
  %109 = vset.pattern.permute.xlu0 0
  %110 = vperm.xlu0 %109, %v43
  %v111 = vpop.permute.xlu0 %110
  %112 = vset.pattern.permute.xlu0 0
  %113 = vperm.xlu0 %112, %v44
  %v114 = vpop.permute.xlu0 %113
  %115 = vset.pattern.permute.xlu0 0
  %116 = vperm.xlu0 %115, %v45
  %v117 = vpop.permute.xlu0 %116
  %118 = vset.pattern.permute.xlu0 0
  %119 = vperm.xlu0 %118, %v46
  %v120 = vpop.permute.xlu0 %119
  %121 = vset.pattern.permute.xlu0 0
  %122 = vperm.xlu0 %121, %v47
  %v123 = vpop.permute.xlu0 %122
  %124 = vset.pattern.permute.xlu0 0
  %125 = vperm.xlu0 %124, %v48
  %v126 = vpop.permute.xlu0 %125
  %127 = vset.pattern.permute.xlu0 0
  %128 = vperm.xlu0 %127, %v49
  %v129 = vpop.permute.xlu0 %128
  %130 = vset.pattern.permute.xlu0 0
  %131 = vperm.xlu0 %130, %v50
  %v132 = vpop.permute.xlu0 %131
  %133 = vset.pattern.permute.xlu0 0
  %134 = vperm.xlu0 %133, %v51
  %v135 = vpop.permute.xlu0 %134
  %136 = vset.pattern.permute.xlu0 0
  %137 = vperm.xlu0 %136, %v52
  %v138 = vpop.permute.xlu0 %137
  %139 = vset.pattern.permute.xlu0 0
  %140 = vperm.xlu0 %139, %v53
  %v141 = vpop.permute.xlu0 %140
  %142 = vset.pattern.permute.xlu0 0
  %143 = vperm.xlu0 %142, %v54
  %v144 = vpop.permute.xlu0 %143
  %145 = vset.pattern.permute.xlu0 0
  %146 = vperm.xlu0 %145, %v55
  %v147 = vpop.permute.xlu0 %146
  %148 = vset.pattern.permute.xlu0 0
  %149 = vperm.xlu0 %148, %v56
  %v150 = vpop.permute.xlu0 %149
  %151 = vset.pattern.permute.xlu0 0
  %152 = vperm.xlu0 %151, %v57
  %v153 = vpop.permute.xlu0 %152
  %vm154 = vcmp.eq.s32.totalorder %v60, %v25
  %vm155 = vcmp.eq.s32.totalorder %v63, %v25
  %vm156 = vcmp.eq.s32.totalorder %v66, %v25
  %vm157 = vcmp.eq.s32.totalorder %v69, %v25
  %vm158 = vcmp.eq.s32.totalorder %v72, %v25
  %vm159 = vcmp.eq.s32.totalorder %v75, %v25
  %vm160 = vcmp.eq.s32.totalorder %v78, %v25
  %vm161 = vcmp.eq.s32.totalorder %v81, %v25
  %vm162 = vcmp.eq.s32.totalorder %v84, %v25
  %vm163 = vcmp.eq.s32.totalorder %v87, %v25
  %vm164 = vcmp.eq.s32.totalorder %v90, %v25
  %vm165 = vcmp.eq.s32.totalorder %v93, %v25
  %vm166 = vcmp.eq.s32.totalorder %v96, %v25
  %vm167 = vcmp.eq.s32.totalorder %v99, %v25
  %vm168 = vcmp.eq.s32.totalorder %v102, %v25
  %vm169 = vcmp.eq.s32.totalorder %v105, %v25
  %vm170 = vcmp.eq.s32.totalorder %v108, %v25
  %vm171 = vcmp.eq.s32.totalorder %v111, %v25
  %vm172 = vcmp.eq.s32.totalorder %v114, %v25
  %vm173 = vcmp.eq.s32.totalorder %v117, %v25
  %vm174 = vcmp.eq.s32.totalorder %v120, %v25
  %vm175 = vcmp.eq.s32.totalorder %v123, %v25
  %vm176 = vcmp.eq.s32.totalorder %v126, %v25
  %vm177 = vcmp.eq.s32.totalorder %v129, %v25
  %vm178 = vcmp.eq.s32.totalorder %v132, %v25
  %vm179 = vcmp.eq.s32.totalorder %v135, %v25
  %vm180 = vcmp.eq.s32.totalorder %v138, %v25
  %vm181 = vcmp.eq.s32.totalorder %v141, %v25
  %vm182 = vcmp.eq.s32.totalorder %v144, %v25
  %vm183 = vcmp.eq.s32.totalorder %v147, %v25
  %vm184 = vcmp.eq.s32.totalorder %v150, %v25
  %vm185 = vcmp.eq.s32.totalorder %v153, %v25
  %v186 = vsel %vm154, 1, 0
  %v187 = vsel %vm155, 1, 0
  %v188 = vsel %vm156, 1, 0
  %v189 = vsel %vm157, 1, 0
  %v190 = vsel %vm158, 1, 0
  %v191 = vsel %vm159, 1, 0
  %v192 = vsel %vm160, 1, 0
  %v193 = vsel %vm161, 1, 0
  %v194 = vsel %vm162, 1, 0
  %v195 = vsel %vm163, 1, 0
  %v196 = vsel %vm164, 1, 0
  %v197 = vsel %vm165, 1, 0
  %v198 = vsel %vm166, 1, 0
  %v199 = vsel %vm167, 1, 0
  %v200 = vsel %vm168, 1, 0
  %v201 = vsel %vm169, 1, 0
  %v202 = vsel %vm170, 1, 0
  %v203 = vsel %vm171, 1, 0
  %v204 = vsel %vm172, 1, 0
  %v205 = vsel %vm173, 1, 0
  %v206 = vsel %vm174, 1, 0
  %v207 = vsel %vm175, 1, 0
  %v208 = vsel %vm176, 1, 0
  %v209 = vsel %vm177, 1, 0
  %v210 = vsel %vm178, 1, 0
  %v211 = vsel %vm179, 1, 0
  %v212 = vsel %vm180, 1, 0
  %v213 = vsel %vm181, 1, 0
  %v214 = vsel %vm182, 1, 0
  %v215 = vsel %vm183, 1, 0
  %v216 = vsel %vm184, 1, 0
  %v217 = vsel %vm185, 1, 0
  %v218 = vcvt.s32.f32 %v186
  %v219 = vcvt.s32.f32 %v187
  %v220 = vcvt.s32.f32 %v188
  %v221 = vcvt.s32.f32 %v189
  %v222 = vcvt.s32.f32 %v190
  %v223 = vcvt.s32.f32 %v191
  %v224 = vcvt.s32.f32 %v192
  %v225 = vcvt.s32.f32 %v193
  %v226 = vcvt.s32.f32 %v194
  %v227 = vcvt.s32.f32 %v195
  %v228 = vcvt.s32.f32 %v196
  %v229 = vcvt.s32.f32 %v197
  %v230 = vcvt.s32.f32 %v198
  %v231 = vcvt.s32.f32 %v199
  %v232 = vcvt.s32.f32 %v200
  %v233 = vcvt.s32.f32 %v201
  %v234 = vcvt.s32.f32 %v202
  %v235 = vcvt.s32.f32 %v203
  %v236 = vcvt.s32.f32 %v204
  %v237 = vcvt.s32.f32 %v205
  %v238 = vcvt.s32.f32 %v206
  %v239 = vcvt.s32.f32 %v207
  %v240 = vcvt.s32.f32 %v208
  %v241 = vcvt.s32.f32 %v209
  %v242 = vcvt.s32.f32 %v210
  %v243 = vcvt.s32.f32 %v211
  %v244 = vcvt.s32.f32 %v212
  %v245 = vcvt.s32.f32 %v213
  %v246 = vcvt.s32.f32 %v214
  %v247 = vcvt.s32.f32 %v215
  %v248 = vcvt.s32.f32 %v216
  %v249 = vcvt.s32.f32 %v217
  %v250 = vpack.c.bf16 %v219, %v218
  %v251 = vpack.c.bf16 %v221, %v220
  %v252 = vpack.c.bf16 %v223, %v222
  %v253 = vpack.c.bf16 %v225, %v224
  %v254 = vpack.c.bf16 %v227, %v226
  %v255 = vpack.c.bf16 %v229, %v228
  %v256 = vpack.c.bf16 %v231, %v230
  %v257 = vpack.c.bf16 %v233, %v232
  %v258 = vpack.c.bf16 %v235, %v234
  %v259 = vpack.c.bf16 %v237, %v236
  %v260 = vpack.c.bf16 %v239, %v238
  %v261 = vpack.c.bf16 %v241, %v240
  %v262 = vpack.c.bf16 %v243, %v242
  %v263 = vpack.c.bf16 %v245, %v244
  %v264 = vpack.c.bf16 %v247, %v246
  %v265 = vpack.c.bf16 %v249, %v248
  %v266 = vld [vmem:[%s0] sm:$0xff]
  %v267 = vld [vmem:[%s0 + $0x8] sm:$0xff]
  %v268 = vld [vmem:[%s0 + $0x10] sm:$0xff]
  %v269 = vld [vmem:[%s0 + $0x18] sm:$0xff]
  %v270 = vld [vmem:[%s0 + $0x20] sm:$0xff]
  %v271 = vld [vmem:[%s0 + $0x28] sm:$0xff]
  %v272 = vld [vmem:[%s0 + $0x30] sm:$0xff]
  %v273 = vld [vmem:[%s0 + $0x38] sm:$0xff]
  %v274 = vld [vmem:[%s0 + $0x40] sm:$0xff]
  %v275 = vld [vmem:[%s0 + $0x48] sm:$0xff]
  %v276 = vld [vmem:[%s0 + $0x50] sm:$0xff]
  %v277 = vld [vmem:[%s0 + $0x58] sm:$0xff]
  %v278 = vld [vmem:[%s0 + $0x60] sm:$0xff]
  %v279 = vld [vmem:[%s0 + $0x68] sm:$0xff]
  %v280 = vld [vmem:[%s0 + $0x70] sm:$0xff]
  %v281 = vld [vmem:[%s0 + $0x78] sm:$0xff]
  %v282 = vld [vmem:[%s0 + $0x80] sm:$0xff]
  %v283 = vld [vmem:[%s0 + $0x88] sm:$0xff]
  %v284 = vld [vmem:[%s0 + $0x90] sm:$0xff]
  %v285 = vld [vmem:[%s0 + $0x98] sm:$0xff]
  %v286 = vld [vmem:[%s0 + $0xa0] sm:$0xff]
  %v287 = vld [vmem:[%s0 + $0xa8] sm:$0xff]
  %v288 = vld [vmem:[%s0 + $0xb0] sm:$0xff]
  %v289 = vld [vmem:[%s0 + $0xb8] sm:$0xff]
  %v290 = vld [vmem:[%s0 + $0xc0] sm:$0xff]
  %v291 = vld [vmem:[%s0 + $0xc8] sm:$0xff]
  %v292 = vld [vmem:[%s0 + $0xd0] sm:$0xff]
  %v293 = vld [vmem:[%s0 + $0xd8] sm:$0xff]
  %v294 = vld [vmem:[%s0 + $0xe0] sm:$0xff]
  %v295 = vld [vmem:[%s0 + $0xe8] sm:$0xff]
  %v296 = vld [vmem:[%s0 + $0xf0] sm:$0xff]
  %v297 = vld [vmem:[%s0 + $0xf8] sm:$0xff]
  %v298 = vpack.c.bf16 %v267, %v266
  %v299 = vpack.c.bf16 %v269, %v268
  %v300 = vpack.c.bf16 %v271, %v270
  %v301 = vpack.c.bf16 %v273, %v272
  %v302 = vpack.c.bf16 %v275, %v274
  %v303 = vpack.c.bf16 %v277, %v276
  %v304 = vpack.c.bf16 %v279, %v278
  %v305 = vpack.c.bf16 %v281, %v280
  %v306 = vpack.c.bf16 %v283, %v282
  %v307 = vpack.c.bf16 %v285, %v284
  %v308 = vpack.c.bf16 %v287, %v286
  %v309 = vpack.c.bf16 %v289, %v288
  %v310 = vpack.c.bf16 %v291, %v290
  %v311 = vpack.c.bf16 %v293, %v292
  %v312 = vpack.c.bf16 %v295, %v294
  %v313 = vpack.c.bf16 %v297, %v296
  %v314 = vld [vmem:[%s2] sm:$0x77]
  %v315 = vld [vmem:[%s3] sm:$0xff]
  %v316 = vld [vmem:[%s3 + $0x8] sm:$0xff]
  %v319 = vunpack.c.l.b16 %v315
  %v320 = vunpack.c.h.b16 %v315
  %v321 = vunpack.c.l.b16 %v316
  %v322 = vunpack.c.h.b16 %v316
  %v323 = vpack.c.b16 %v321, %v319
  %v324 = vpack.c.b16 %v322, %v320
  %vm327 = vcmask 130048
  %v329 = vsel %vm327, %v250, 0
  %v332 = vsel %vm327, %v251, 0
  %v335 = vsel %vm327, %v252, 0
  %v338 = vsel %vm327, %v253, 0
  %v341 = vsel %vm327, %v254, 0
  %v344 = vsel %vm327, %v255, 0
  %v347 = vsel %vm327, %v256, 0
  %v350 = vsel %vm327, %v257, 0
  %v353 = vsel %vm327, %v258, 0
  %v356 = vsel %vm327, %v259, 0
  %v359 = vsel %vm327, %v260, 0
  %v362 = vsel %vm327, %v261, 0
  %v365 = vsel %vm327, %v262, 0
  %v368 = vsel %vm327, %v263, 0
  %v371 = vsel %vm327, %v264, 0
  %v374 = vsel %vm327, %v265, 0
  %376 = vmatprep.subr.bf16.mxu0 %v324
  %377 = vmatpush1.bf16.msra.mxu0 %v323
  %378 = vmatprep.subr.bf16.mxu0 0
  %379 = vmatpush1.bf16.msra.mxu0 0
  %380 = vmatprep.subr.bf16.mxu0 0
  %381 = vmatpush1.bf16.msra.mxu0 0
  %382 = vmatprep.subr.bf16.mxu0 0
  %383 = vmatpush1.bf16.msra.mxu0 0
  %384 = vmatprep.subr.bf16.mxu0 0
  %385 = vmatpush1.bf16.msra.mxu0 0
  %386 = vmatprep.subr.bf16.mxu0 0
  %387 = vmatpush1.bf16.msra.mxu0 0
  %388 = vmatprep.subr.bf16.mxu0 0
  %389 = vmatpush1.bf16.msra.mxu0 0
  %390 = vmatprep.subr.bf16.mxu0 0
  %391 = vmatpush1.bf16.msra.mxu0 0
  %392 = vmatprep.subr.bf16.mxu0 0
  %393 = vmatpush1.bf16.msra.mxu0 0
  %394 = vmatprep.subr.bf16.mxu0 0
  %395 = vmatpush1.bf16.msra.mxu0 0
  %396 = vmatprep.subr.bf16.mxu0 0
  %397 = vmatpush1.bf16.msra.mxu0 0
  %398 = vmatprep.subr.bf16.mxu0 0
  %399 = vmatpush1.bf16.msra.mxu0 0
  %400 = vmatprep.subr.bf16.mxu0 0
  %401 = vmatpush1.bf16.msra.mxu0 0
  %402 = vmatprep.subr.bf16.mxu0 0
  %403 = vmatpush1.bf16.msra.mxu0 0
  %404 = vmatprep.subr.bf16.mxu0 0
  %405 = vmatpush1.bf16.msra.mxu0 0
  %406 = vmatprep.subr.bf16.mxu0 0
  %407 = vmatpush1.bf16.msra.mxu0 0
  %408 = vmatprep.mubr.bf16.mxu0 0
  %409 = vmatmul.mubr.bf16.gmra.mrb[0].mxu0 %v329
  %v410 = vpop.f32.mrb[0].mxu0
  %v411 = vadd.f32 0.0, %v410
  %v412 = vpop.f32.mrb[0].mxu0
  %v413 = vadd.f32 0.0, %v412
  %v414 = vpop.f32.mrb[0].mxu0
  %v415 = vadd.f32 0.0, %v414
  %v416 = vpop.f32.mrb[0].mxu0
  %v417 = vadd.f32 0.0, %v416
  %418 = vmatprep.mubr.bf16.mxu0 0
  %419 = vmatmul.mubr.bf16.gmra.mrb[0].mxu0 %v332
  %v420 = vpop.f32.mrb[0].mxu0
  %v421 = vadd.f32 0.0, %v420
  %v422 = vpop.f32.mrb[0].mxu0
  %v423 = vadd.f32 0.0, %v422
  %v424 = vpop.f32.mrb[0].mxu0
  %v425 = vadd.f32 0.0, %v424
  %v426 = vpop.f32.mrb[0].mxu0
  %v427 = vadd.f32 0.0, %v426
  %428 = vmatprep.mubr.bf16.mxu0 0
  %429 = vmatmul.mubr.bf16.gmra.mrb[0].mxu0 %v335
  %v430 = vpop.f32.mrb[0].mxu0
  %v431 = vadd.f32 0.0, %v430
  %v432 = vpop.f32.mrb[0].mxu0
  %v433 = vadd.f32 0.0, %v432
  %v434 = vpop.f32.mrb[0].mxu0
  %v435 = vadd.f32 0.0, %v434
  %v436 = vpop.f32.mrb[0].mxu0
  %v437 = vadd.f32 0.0, %v436
  %438 = vmatprep.mubr.bf16.mxu0 0
  %439 = vmatmul.mubr.bf16.gmra.mrb[0].mxu0 %v338
  %v440 = vpop.f32.mrb[0].mxu0
  %v441 = vadd.f32 0.0, %v440
  %v442 = vpop.f32.mrb[0].mxu0
  %v443 = vadd.f32 0.0, %v442
  %v444 = vpop.f32.mrb[0].mxu0
  %v445 = vadd.f32 0.0, %v444
  %v446 = vpop.f32.mrb[0].mxu0
  %v447 = vadd.f32 0.0, %v446
  %448 = vmatprep.mubr.bf16.mxu0 0
  %449 = vmatmul.mubr.bf16.gmra.mrb[0].mxu0 %v341
  %v450 = vpop.f32.mrb[0].mxu0
  %v451 = vadd.f32 0.0, %v450
  %v452 = vpop.f32.mrb[0].mxu0
  %v453 = vadd.f32 0.0, %v452
  %v454 = vpop.f32.mrb[0].mxu0
  %v455 = vadd.f32 0.0, %v454
  %v456 = vpop.f32.mrb[0].mxu0
  %v457 = vadd.f32 0.0, %v456
  %458 = vmatprep.mubr.bf16.mxu0 0
  %459 = vmatmul.mubr.bf16.gmra.mrb[0].mxu0 %v344
  %v460 = vpop.f32.mrb[0].mxu0
  %v461 = vadd.f32 0.0, %v460
  %v462 = vpop.f32.mrb[0].mxu0
  %v463 = vadd.f32 0.0, %v462
  %v464 = vpop.f32.mrb[0].mxu0
  %v465 = vadd.f32 0.0, %v464
  %v466 = vpop.f32.mrb[0].mxu0
  %v467 = vadd.f32 0.0, %v466
  %468 = vmatprep.mubr.bf16.mxu0 0
  %469 = vmatmul.mubr.bf16.gmra.mrb[0].mxu0 %v347
  %v470 = vpop.f32.mrb[0].mxu0
  %v471 = vadd.f32 0.0, %v470
  %v472 = vpop.f32.mrb[0].mxu0
  %v473 = vadd.f32 0.0, %v472
  %v474 = vpop.f32.mrb[0].mxu0
  %v475 = vadd.f32 0.0, %v474
  %v476 = vpop.f32.mrb[0].mxu0
  %v477 = vadd.f32 0.0, %v476
  %478 = vmatprep.mubr.bf16.mxu0 0
  %479 = vmatmul.mubr.bf16.gmra.mrb[0].mxu0 %v350
  %v480 = vpop.f32.mrb[0].mxu0
  %v481 = vadd.f32 0.0, %v480
  %v482 = vpop.f32.mrb[0].mxu0
  %v483 = vadd.f32 0.0, %v482
  %v484 = vpop.f32.mrb[0].mxu0
  %v485 = vadd.f32 0.0, %v484
  %v486 = vpop.f32.mrb[0].mxu0
  %v487 = vadd.f32 0.0, %v486
  %488 = vmatprep.mubr.bf16.mxu0 0
  %489 = vmatmul.mubr.bf16.gmra.mrb[0].mxu0 %v353
  %v490 = vpop.f32.mrb[0].mxu0
  %v491 = vadd.f32 0.0, %v490
  %v492 = vpop.f32.mrb[0].mxu0
  %v493 = vadd.f32 0.0, %v492
  %v494 = vpop.f32.mrb[0].mxu0
  %v495 = vadd.f32 0.0, %v494
  %v496 = vpop.f32.mrb[0].mxu0
  %v497 = vadd.f32 0.0, %v496
  %498 = vmatprep.mubr.bf16.mxu0 0
  %499 = vmatmul.mubr.bf16.gmra.mrb[0].mxu0 %v356
  %v500 = vpop.f32.mrb[0].mxu0
  %v501 = vadd.f32 0.0, %v500
  %v502 = vpop.f32.mrb[0].mxu0
  %v503 = vadd.f32 0.0, %v502
  %v504 = vpop.f32.mrb[0].mxu0
  %v505 = vadd.f32 0.0, %v504
  %v506 = vpop.f32.mrb[0].mxu0
  %v507 = vadd.f32 0.0, %v506
  %508 = vmatprep.mubr.bf16.mxu0 0
  %509 = vmatmul.mubr.bf16.gmra.mrb[0].mxu0 %v359
  %v510 = vpop.f32.mrb[0].mxu0
  %v511 = vadd.f32 0.0, %v510
  %v512 = vpop.f32.mrb[0].mxu0
  %v513 = vadd.f32 0.0, %v512
  %v514 = vpop.f32.mrb[0].mxu0
  %v515 = vadd.f32 0.0, %v514
  %v516 = vpop.f32.mrb[0].mxu0
  %v517 = vadd.f32 0.0, %v516
  %518 = vmatprep.mubr.bf16.mxu0 0
  %519 = vmatmul.mubr.bf16.gmra.mrb[0].mxu0 %v362
  %v520 = vpop.f32.mrb[0].mxu0
  %v521 = vadd.f32 0.0, %v520
  %v522 = vpop.f32.mrb[0].mxu0
  %v523 = vadd.f32 0.0, %v522
  %v524 = vpop.f32.mrb[0].mxu0
  %v525 = vadd.f32 0.0, %v524
  %v526 = vpop.f32.mrb[0].mxu0
  %v527 = vadd.f32 0.0, %v526
  %528 = vmatprep.mubr.bf16.mxu0 0
  %529 = vmatmul.mubr.bf16.gmra.mrb[0].mxu0 %v365
  %v530 = vpop.f32.mrb[0].mxu0
  %v531 = vadd.f32 0.0, %v530
  %v532 = vpop.f32.mrb[0].mxu0
  %v533 = vadd.f32 0.0, %v532
  %v534 = vpop.f32.mrb[0].mxu0
  %v535 = vadd.f32 0.0, %v534
  %v536 = vpop.f32.mrb[0].mxu0
  %v537 = vadd.f32 0.0, %v536
  %538 = vmatprep.mubr.bf16.mxu0 0
  %539 = vmatmul.mubr.bf16.gmra.mrb[0].mxu0 %v368
  %v540 = vpop.f32.mrb[0].mxu0
  %v541 = vadd.f32 0.0, %v540
  %v542 = vpop.f32.mrb[0].mxu0
  %v543 = vadd.f32 0.0, %v542
  %v544 = vpop.f32.mrb[0].mxu0
  %v545 = vadd.f32 0.0, %v544
  %v546 = vpop.f32.mrb[0].mxu0
  %v547 = vadd.f32 0.0, %v546
  %548 = vmatprep.mubr.bf16.mxu0 0
  %549 = vmatmul.mubr.bf16.gmra.mrb[0].mxu0 %v371
  %v550 = vpop.f32.mrb[0].mxu0
  %v551 = vadd.f32 0.0, %v550
  %v552 = vpop.f32.mrb[0].mxu0
  %v553 = vadd.f32 0.0, %v552
  %v554 = vpop.f32.mrb[0].mxu0
  %v555 = vadd.f32 0.0, %v554
  %v556 = vpop.f32.mrb[0].mxu0
  %v557 = vadd.f32 0.0, %v556
  %558 = vmatprep.mubr.bf16.mxu0 0
  %559 = vmatmul.mubr.bf16.gmra.mrb[0].mxu0 %v374
  %v560 = vpop.f32.mrb[0].mxu0
  %v561 = vadd.f32 0.0, %v560
  %v562 = vpop.f32.mrb[0].mxu0
  %v563 = vadd.f32 0.0, %v562
  %v564 = vpop.f32.mrb[0].mxu0
  %v565 = vadd.f32 0.0, %v564
  %v566 = vpop.f32.mrb[0].mxu0
  %v567 = vadd.f32 0.0, %v566
  %568 = vdwg.mxu0
  %v570 = vunpack.c.l.b16 %v314
  %v571 = vunpack.c.h.b16 %v314
  %v572 = vpack.c.b16 %v570, %v570
  %v573 = vpack.c.b16 %v571, %v571
  %vm574 = vcmask 48128
  %v576 = vsel %vm574, %v298, 0
  %v579 = vsel %vm574, %v299, 0
  %v582 = vsel %vm574, %v300, 0
  %v585 = vsel %vm574, %v301, 0
  %v588 = vsel %vm574, %v302, 0
  %v591 = vsel %vm574, %v303, 0
  %v594 = vsel %vm574, %v304, 0
  %v597 = vsel %vm574, %v305, 0
  %v600 = vsel %vm574, %v306, 0
  %v603 = vsel %vm574, %v307, 0
  %v606 = vsel %vm574, %v308, 0
  %v609 = vsel %vm574, %v309, 0
  %v612 = vsel %vm574, %v310, 0
  %v615 = vsel %vm574, %v311, 0
  %v618 = vsel %vm574, %v312, 0
  %v621 = vsel %vm574, %v313, 0
  %vm623 = vcmask 1042432
  %v625 = vsel %vm623, %v572, 0
  %v628 = vsel %vm623, %v573, 0
  %630 = vmatprep.subr.bf16.mxu0 %v628
  %631 = vmatpush1.bf16.msra.mxu0 %v625
  %632 = vmatprep.subr.bf16.mxu0 0
  %633 = vmatpush1.bf16.msra.mxu0 0
  %634 = vmatprep.subr.bf16.mxu0 0
  %635 = vmatpush1.bf16.msra.mxu0 0
  %636 = vmatprep.subr.bf16.mxu0 0
  %637 = vmatpush1.bf16.msra.mxu0 0
  %638 = vmatprep.subr.bf16.mxu0 0
  %639 = vmatpush1.bf16.msra.mxu0 0
  %640 = vmatprep.subr.bf16.mxu0 0
  %641 = vmatpush1.bf16.msra.mxu0 0
  %642 = vmatprep.subr.bf16.mxu0 0
  %643 = vmatpush1.bf16.msra.mxu0 0
  %644 = vmatprep.subr.bf16.mxu0 0
  %645 = vmatpush1.bf16.msra.mxu0 0
  %646 = vmatprep.subr.bf16.mxu0 0
  %647 = vmatpush1.bf16.msra.mxu0 0
  %648 = vmatprep.subr.bf16.mxu0 0
  %649 = vmatpush1.bf16.msra.mxu0 0
  %650 = vmatprep.subr.bf16.mxu0 0
  %651 = vmatpush1.bf16.msra.mxu0 0
  %652 = vmatprep.subr.bf16.mxu0 0
  %653 = vmatpush1.bf16.msra.mxu0 0
  %654 = vmatprep.subr.bf16.mxu0 0
  %655 = vmatpush1.bf16.msra.mxu0 0
  %656 = vmatprep.subr.bf16.mxu0 0
  %657 = vmatpush1.bf16.msra.mxu0 0
  %658 = vmatprep.subr.bf16.mxu0 0
  %659 = vmatpush1.bf16.msra.mxu0 0
  %660 = vmatprep.subr.bf16.mxu0 0
  %661 = vmatpush1.bf16.msra.mxu0 0
  %662 = vmatprep.mubr.bf16.mxu0 0
  %663 = vmatmul.mubr.bf16.gmra.mrb[0].mxu0 %v576
  %v664 = vpop.f32.mrb[0].mxu0
  %v665 = vadd.f32 %v411, %v664
  %v666 = vpop.f32.mrb[0].mxu0
  %v667 = vadd.f32 %v413, %v666
  %v668 = vpop.f32.mrb[0].mxu0
  %v669 = vadd.f32 %v415, %v668
  %v670 = vpop.f32.mrb[0].mxu0
  %v671 = vadd.f32 %v417, %v670
  %672 = vmatprep.mubr.bf16.mxu0 0
  %673 = vmatmul.mubr.bf16.gmra.mrb[0].mxu0 %v579
  %v674 = vpop.f32.mrb[0].mxu0
  %v675 = vadd.f32 %v421, %v674
  %v676 = vpop.f32.mrb[0].mxu0
  %v677 = vadd.f32 %v423, %v676
  %v678 = vpop.f32.mrb[0].mxu0
  %v679 = vadd.f32 %v425, %v678
  %v680 = vpop.f32.mrb[0].mxu0
  %v681 = vadd.f32 %v427, %v680
  %682 = vmatprep.mubr.bf16.mxu0 0
  %683 = vmatmul.mubr.bf16.gmra.mrb[0].mxu0 %v582
  %v684 = vpop.f32.mrb[0].mxu0
  %v685 = vadd.f32 %v431, %v684
  %v686 = vpop.f32.mrb[0].mxu0
  %v687 = vadd.f32 %v433, %v686
  %v688 = vpop.f32.mrb[0].mxu0
  %v689 = vadd.f32 %v435, %v688
  %v690 = vpop.f32.mrb[0].mxu0
  %v691 = vadd.f32 %v437, %v690
  %692 = vmatprep.mubr.bf16.mxu0 0
  %693 = vmatmul.mubr.bf16.gmra.mrb[0].mxu0 %v585
  %v694 = vpop.f32.mrb[0].mxu0
  %v695 = vadd.f32 %v441, %v694
  %v696 = vpop.f32.mrb[0].mxu0
  %v697 = vadd.f32 %v443, %v696
  %v698 = vpop.f32.mrb[0].mxu0
  %v699 = vadd.f32 %v445, %v698
  %v700 = vpop.f32.mrb[0].mxu0
  %v701 = vadd.f32 %v447, %v700
  %702 = vmatprep.mubr.bf16.mxu0 0
  %703 = vmatmul.mubr.bf16.gmra.mrb[0].mxu0 %v588
  %v704 = vpop.f32.mrb[0].mxu0
  %v705 = vadd.f32 %v451, %v704
  %v706 = vpop.f32.mrb[0].mxu0
  %v707 = vadd.f32 %v453, %v706
  %v708 = vpop.f32.mrb[0].mxu0
  %v709 = vadd.f32 %v455, %v708
  %v710 = vpop.f32.mrb[0].mxu0
  %v711 = vadd.f32 %v457, %v710
  %712 = vmatprep.mubr.bf16.mxu0 0
  %713 = vmatmul.mubr.bf16.gmra.mrb[0].mxu0 %v591
  %v714 = vpop.f32.mrb[0].mxu0
  %v715 = vadd.f32 %v461, %v714
  %v716 = vpop.f32.mrb[0].mxu0
  %v717 = vadd.f32 %v463, %v716
  %v718 = vpop.f32.mrb[0].mxu0
  %v719 = vadd.f32 %v465, %v718
  %v720 = vpop.f32.mrb[0].mxu0
  %v721 = vadd.f32 %v467, %v720
  %722 = vmatprep.mubr.bf16.mxu0 0
  %723 = vmatmul.mubr.bf16.gmra.mrb[0].mxu0 %v594
  %v724 = vpop.f32.mrb[0].mxu0
  %v725 = vadd.f32 %v471, %v724
  %v726 = vpop.f32.mrb[0].mxu0
  %v727 = vadd.f32 %v473, %v726
  %v728 = vpop.f32.mrb[0].mxu0
  %v729 = vadd.f32 %v475, %v728
  %v730 = vpop.f32.mrb[0].mxu0
  %v731 = vadd.f32 %v477, %v730
  %732 = vmatprep.mubr.bf16.mxu0 0
  %733 = vmatmul.mubr.bf16.gmra.mrb[0].mxu0 %v597
  %v734 = vpop.f32.mrb[0].mxu0
  %v735 = vadd.f32 %v481, %v734
  %v736 = vpop.f32.mrb[0].mxu0
  %v737 = vadd.f32 %v483, %v736
  %v738 = vpop.f32.mrb[0].mxu0
  %v739 = vadd.f32 %v485, %v738
  %v740 = vpop.f32.mrb[0].mxu0
  %v741 = vadd.f32 %v487, %v740
  %742 = vmatprep.mubr.bf16.mxu0 0
  %743 = vmatmul.mubr.bf16.gmra.mrb[0].mxu0 %v600
  %v744 = vpop.f32.mrb[0].mxu0
  %v745 = vadd.f32 %v491, %v744
  %v746 = vpop.f32.mrb[0].mxu0
  %v747 = vadd.f32 %v493, %v746
  %v748 = vpop.f32.mrb[0].mxu0
  %v749 = vadd.f32 %v495, %v748
  %v750 = vpop.f32.mrb[0].mxu0
  %v751 = vadd.f32 %v497, %v750
  %752 = vmatprep.mubr.bf16.mxu0 0
  %753 = vmatmul.mubr.bf16.gmra.mrb[0].mxu0 %v603
  %v754 = vpop.f32.mrb[0].mxu0
  %v755 = vadd.f32 %v501, %v754
  %v756 = vpop.f32.mrb[0].mxu0
  %v757 = vadd.f32 %v503, %v756
  %v758 = vpop.f32.mrb[0].mxu0
  %v759 = vadd.f32 %v505, %v758
  %v760 = vpop.f32.mrb[0].mxu0
  %v761 = vadd.f32 %v507, %v760
  %762 = vmatprep.mubr.bf16.mxu0 0
  %763 = vmatmul.mubr.bf16.gmra.mrb[0].mxu0 %v606
  %v764 = vpop.f32.mrb[0].mxu0
  %v765 = vadd.f32 %v511, %v764
  %v766 = vpop.f32.mrb[0].mxu0
  %v767 = vadd.f32 %v513, %v766
  %v768 = vpop.f32.mrb[0].mxu0
  %v769 = vadd.f32 %v515, %v768
  %v770 = vpop.f32.mrb[0].mxu0
  %v771 = vadd.f32 %v517, %v770
  %772 = vmatprep.mubr.bf16.mxu0 0
  %773 = vmatmul.mubr.bf16.gmra.mrb[0].mxu0 %v609
  %v774 = vpop.f32.mrb[0].mxu0
  %v775 = vadd.f32 %v521, %v774
  %v776 = vpop.f32.mrb[0].mxu0
  %v777 = vadd.f32 %v523, %v776
  %v778 = vpop.f32.mrb[0].mxu0
  %v779 = vadd.f32 %v525, %v778
  %v780 = vpop.f32.mrb[0].mxu0
  %v781 = vadd.f32 %v527, %v780
  %782 = vmatprep.mubr.bf16.mxu0 0
  %783 = vmatmul.mubr.bf16.gmra.mrb[0].mxu0 %v612
  %v784 = vpop.f32.mrb[0].mxu0
  %v785 = vadd.f32 %v531, %v784
  %v786 = vpop.f32.mrb[0].mxu0
  %v787 = vadd.f32 %v533, %v786
  %v788 = vpop.f32.mrb[0].mxu0
  %v789 = vadd.f32 %v535, %v788
  %v790 = vpop.f32.mrb[0].mxu0
  %v791 = vadd.f32 %v537, %v790
  %792 = vmatprep.mubr.bf16.mxu0 0
  %793 = vmatmul.mubr.bf16.gmra.mrb[0].mxu0 %v615
  %v794 = vpop.f32.mrb[0].mxu0
  %v795 = vadd.f32 %v541, %v794
  %v796 = vpop.f32.mrb[0].mxu0
  %v797 = vadd.f32 %v543, %v796
  %v798 = vpop.f32.mrb[0].mxu0
  %v799 = vadd.f32 %v545, %v798
  %v800 = vpop.f32.mrb[0].mxu0
  %v801 = vadd.f32 %v547, %v800
  %802 = vmatprep.mubr.bf16.mxu0 0
  %803 = vmatmul.mubr.bf16.gmra.mrb[0].mxu0 %v618
  %v804 = vpop.f32.mrb[0].mxu0
  %v805 = vadd.f32 %v551, %v804
  %v806 = vpop.f32.mrb[0].mxu0
  %v807 = vadd.f32 %v553, %v806
  %v808 = vpop.f32.mrb[0].mxu0
  %v809 = vadd.f32 %v555, %v808
  %v810 = vpop.f32.mrb[0].mxu0
  %v811 = vadd.f32 %v557, %v810
  %812 = vmatprep.mubr.bf16.mxu0 0
  %813 = vmatmul.mubr.bf16.gmra.mrb[0].mxu0 %v621
  %v814 = vpop.f32.mrb[0].mxu0
  %v815 = vadd.f32 %v561, %v814
  %v816 = vpop.f32.mrb[0].mxu0
  %v817 = vadd.f32 %v563, %v816
  %v818 = vpop.f32.mrb[0].mxu0
  %v819 = vadd.f32 %v565, %v818
  %v820 = vpop.f32.mrb[0].mxu0
  %v821 = vadd.f32 %v567, %v820
  %822 = vdwg.mxu0
  %v823 = vmax.f32 %v665, 0.0
  %v824 = vmax.f32 %v667, 0.0
  %v825 = vmax.f32 %v669, 0.0
  %v826 = vmax.f32 %v671, 0.0
  %v827 = vmax.f32 %v675, 0.0
  %v828 = vmax.f32 %v677, 0.0
  %v829 = vmax.f32 %v679, 0.0
  %v830 = vmax.f32 %v681, 0.0
  %v831 = vmax.f32 %v685, 0.0
  %v832 = vmax.f32 %v687, 0.0
  %v833 = vmax.f32 %v689, 0.0
  %v834 = vmax.f32 %v691, 0.0
  %v835 = vmax.f32 %v695, 0.0
  %v836 = vmax.f32 %v697, 0.0
  %v837 = vmax.f32 %v699, 0.0
  %v838 = vmax.f32 %v701, 0.0
  %v839 = vmax.f32 %v705, 0.0
  %v840 = vmax.f32 %v707, 0.0
  %v841 = vmax.f32 %v709, 0.0
  %v842 = vmax.f32 %v711, 0.0
  %v843 = vmax.f32 %v715, 0.0
  %v844 = vmax.f32 %v717, 0.0
  %v845 = vmax.f32 %v719, 0.0
  %v846 = vmax.f32 %v721, 0.0
  %v847 = vmax.f32 %v725, 0.0
  %v848 = vmax.f32 %v727, 0.0
  %v849 = vmax.f32 %v729, 0.0
  %v850 = vmax.f32 %v731, 0.0
  %v851 = vmax.f32 %v735, 0.0
  %v852 = vmax.f32 %v737, 0.0
  %v853 = vmax.f32 %v739, 0.0
  %v854 = vmax.f32 %v741, 0.0
  %v855 = vmax.f32 %v745, 0.0
  %v856 = vmax.f32 %v747, 0.0
  %v857 = vmax.f32 %v749, 0.0
  %v858 = vmax.f32 %v751, 0.0
  %v859 = vmax.f32 %v755, 0.0
  %v860 = vmax.f32 %v757, 0.0
  %v861 = vmax.f32 %v759, 0.0
  %v862 = vmax.f32 %v761, 0.0
  %v863 = vmax.f32 %v765, 0.0
  %v864 = vmax.f32 %v767, 0.0
  %v865 = vmax.f32 %v769, 0.0
  %v866 = vmax.f32 %v771, 0.0
  %v867 = vmax.f32 %v775, 0.0
  %v868 = vmax.f32 %v777, 0.0
  %v869 = vmax.f32 %v779, 0.0
  %v870 = vmax.f32 %v781, 0.0
  %v871 = vmax.f32 %v785, 0.0
  %v872 = vmax.f32 %v787, 0.0
  %v873 = vmax.f32 %v789, 0.0
  %v874 = vmax.f32 %v791, 0.0
  %v875 = vmax.f32 %v795, 0.0
  %v876 = vmax.f32 %v797, 0.0
  %v877 = vmax.f32 %v799, 0.0
  %v878 = vmax.f32 %v801, 0.0
  %v879 = vmax.f32 %v805, 0.0
  %v880 = vmax.f32 %v807, 0.0
  %v881 = vmax.f32 %v809, 0.0
  %v882 = vmax.f32 %v811, 0.0
  %v883 = vmax.f32 %v815, 0.0
  %v884 = vmax.f32 %v817, 0.0
  %v885 = vmax.f32 %v819, 0.0
  %v886 = vmax.f32 %v821, 0.0
  %v887 = vpack.c.bf16 %v825, %v823
  %v888 = vpack.c.bf16 %v826, %v824
  %v889 = vpack.c.bf16 %v829, %v827
  %v890 = vpack.c.bf16 %v830, %v828
  %v891 = vpack.c.bf16 %v833, %v831
  %v892 = vpack.c.bf16 %v834, %v832
  %v893 = vpack.c.bf16 %v837, %v835
  %v894 = vpack.c.bf16 %v838, %v836
  %v895 = vpack.c.bf16 %v841, %v839
  %v896 = vpack.c.bf16 %v842, %v840
  %v897 = vpack.c.bf16 %v845, %v843
  %v898 = vpack.c.bf16 %v846, %v844
  %v899 = vpack.c.bf16 %v849, %v847
  %v900 = vpack.c.bf16 %v850, %v848
  %v901 = vpack.c.bf16 %v853, %v851
  %v902 = vpack.c.bf16 %v854, %v852
  %v903 = vpack.c.bf16 %v857, %v855
  %v904 = vpack.c.bf16 %v858, %v856
  %v905 = vpack.c.bf16 %v861, %v859
  %v906 = vpack.c.bf16 %v862, %v860
  %v907 = vpack.c.bf16 %v865, %v863
  %v908 = vpack.c.bf16 %v866, %v864
  %v909 = vpack.c.bf16 %v869, %v867
  %v910 = vpack.c.bf16 %v870, %v868
  %v911 = vpack.c.bf16 %v873, %v871
  %v912 = vpack.c.bf16 %v874, %v872
  %v913 = vpack.c.bf16 %v877, %v875
  %v914 = vpack.c.bf16 %v878, %v876
  %v915 = vpack.c.bf16 %v881, %v879
  %v916 = vpack.c.bf16 %v882, %v880
  %v917 = vpack.c.bf16 %v885, %v883
  %v918 = vpack.c.bf16 %v886, %v884
  %v919 = vld [vmem:[%s4] sm:$0xff]
  %v920 = vld [vmem:[%s4 + $0x8] sm:$0xff]
  %v921 = vld [vmem:[%s4 + $0x10] sm:$0xff]
  %v922 = vld [vmem:[%s4 + $0x18] sm:$0xff]
  %v923 = vld [vmem:[%s4 + $0x20] sm:$0xff]
  %v924 = vld [vmem:[%s4 + $0x28] sm:$0xff]
  %v925 = vld [vmem:[%s4 + $0x30] sm:$0xff]
  %v926 = vld [vmem:[%s4 + $0x38] sm:$0xff]
  %v927 = vld [vmem:[%s4 + $0x40] sm:$0xff]
  %v928 = vld [vmem:[%s4 + $0x48] sm:$0xff]
  %v929 = vld [vmem:[%s4 + $0x50] sm:$0xff]
  %v930 = vld [vmem:[%s4 + $0x58] sm:$0xff]
  %v931 = vld [vmem:[%s4 + $0x60] sm:$0xff]
  %v932 = vld [vmem:[%s4 + $0x68] sm:$0xff]
  %v933 = vld [vmem:[%s4 + $0x70] sm:$0xff]
  %v934 = vld [vmem:[%s4 + $0x78] sm:$0xff]
  %v935 = vld [vmem:[%s4 + $0x80] sm:$0xff]
  %v936 = vld [vmem:[%s4 + $0x88] sm:$0xff]
  %v955 = vunpack.c.l.b16 %v919
  %v956 = vunpack.c.h.b16 %v919
  %v957 = vunpack.c.l.b16 %v920
  %v958 = vunpack.c.h.b16 %v920
  %v959 = vunpack.c.l.b16 %v921
  %v960 = vunpack.c.h.b16 %v921
  %v961 = vunpack.c.l.b16 %v922
  %v962 = vunpack.c.h.b16 %v922
  %v963 = vunpack.c.l.b16 %v923
  %v964 = vunpack.c.h.b16 %v923
  %v965 = vunpack.c.l.b16 %v924
  %v966 = vunpack.c.h.b16 %v924
  %v967 = vunpack.c.l.b16 %v925
  %v968 = vunpack.c.h.b16 %v925
  %v969 = vunpack.c.l.b16 %v926
  %v970 = vunpack.c.h.b16 %v926
  %v971 = vunpack.c.l.b16 %v927
  %v972 = vunpack.c.h.b16 %v927
  %v973 = vunpack.c.l.b16 %v928
  %v974 = vunpack.c.h.b16 %v928
  %v975 = vunpack.c.l.b16 %v929
  %v976 = vunpack.c.h.b16 %v929
  %v977 = vunpack.c.l.b16 %v930
  %v978 = vunpack.c.h.b16 %v930
  %v979 = vunpack.c.l.b16 %v931
  %v980 = vunpack.c.h.b16 %v931
  %v981 = vunpack.c.l.b16 %v932
  %v982 = vunpack.c.h.b16 %v932
  %v983 = vunpack.c.l.b16 %v933
  %v984 = vunpack.c.h.b16 %v933
  %v985 = vunpack.c.l.b16 %v934
  %v986 = vunpack.c.h.b16 %v934
  %v987 = vunpack.c.l.b16 %v935
  %v988 = vunpack.c.h.b16 %v935
  %v989 = vunpack.c.l.b16 %v936
  %v990 = vunpack.c.h.b16 %v936
  %v991 = vpack.c.b16 %v957, %v955
  %v992 = vpack.c.b16 %v958, %v956
  %v993 = vpack.c.b16 %v961, %v959
  %v994 = vpack.c.b16 %v962, %v960
  %v995 = vpack.c.b16 %v965, %v963
  %v996 = vpack.c.b16 %v966, %v964
  %v997 = vpack.c.b16 %v969, %v967
  %v998 = vpack.c.b16 %v970, %v968
  %v999 = vpack.c.b16 %v973, %v971
  %v1000 = vpack.c.b16 %v974, %v972
  %v1001 = vpack.c.b16 %v977, %v975
  %v1002 = vpack.c.b16 %v978, %v976
  %v1003 = vpack.c.b16 %v981, %v979
  %v1004 = vpack.c.b16 %v982, %v980
  %v1005 = vpack.c.b16 %v985, %v983
  %v1006 = vpack.c.b16 %v986, %v984
  %v1007 = vpack.c.b16 %v989, %v987
  %v1008 = vpack.c.b16 %v990, %v988
  %v1028 = vsel %vm327, %v888, 0
  %v1031 = vsel %vm327, %v890, 0
  %v1034 = vsel %vm327, %v892, 0
  %v1037 = vsel %vm327, %v894, 0
  %v1040 = vsel %vm327, %v896, 0
  %v1043 = vsel %vm327, %v898, 0
  %v1046 = vsel %vm327, %v900, 0
  %v1049 = vsel %vm327, %v902, 0
  %v1052 = vsel %vm327, %v904, 0
  %v1055 = vsel %vm327, %v906, 0
  %v1058 = vsel %vm327, %v908, 0
  %v1061 = vsel %vm327, %v910, 0
  %v1064 = vsel %vm327, %v912, 0
  %v1067 = vsel %vm327, %v914, 0
  %v1070 = vsel %vm327, %v916, 0
  %v1073 = vsel %vm327, %v918, 0
  %1075 = vmatprep.subr.bf16.mxu0 %v992
  %1076 = vmatpush1.bf16.msra.mxu0 %v991
  %1077 = vmatprep.subr.bf16.mxu0 %v994
  %1078 = vmatpush1.bf16.msra.mxu0 %v993
  %1079 = vmatprep.subr.bf16.mxu0 %v996
  %1080 = vmatpush1.bf16.msra.mxu0 %v995
  %1081 = vmatprep.subr.bf16.mxu0 %v998
  %1082 = vmatpush1.bf16.msra.mxu0 %v997
  %1083 = vmatprep.subr.bf16.mxu0 %v1000
  %1084 = vmatpush1.bf16.msra.mxu0 %v999
  %1085 = vmatprep.subr.bf16.mxu0 %v1002
  %1086 = vmatpush1.bf16.msra.mxu0 %v1001
  %1087 = vmatprep.subr.bf16.mxu0 %v1004
  %1088 = vmatpush1.bf16.msra.mxu0 %v1003
  %1089 = vmatprep.subr.bf16.mxu0 %v1006
  %1090 = vmatpush1.bf16.msra.mxu0 %v1005
  %1091 = vmatprep.subr.bf16.mxu0 %v1008
  %1092 = vmatpush1.bf16.msra.mxu0 %v1007
  %1093 = vmatprep.subr.bf16.mxu0 0
  %1094 = vmatpush1.bf16.msra.mxu0 0
  %1095 = vmatprep.subr.bf16.mxu0 0
  %1096 = vmatpush1.bf16.msra.mxu0 0
  %1097 = vmatprep.subr.bf16.mxu0 0
  %1098 = vmatpush1.bf16.msra.mxu0 0
  %1099 = vmatprep.subr.bf16.mxu0 0
  %1100 = vmatpush1.bf16.msra.mxu0 0
  %1101 = vmatprep.subr.bf16.mxu0 0
  %1102 = vmatpush1.bf16.msra.mxu0 0
  %1103 = vmatprep.subr.bf16.mxu0 0
  %1104 = vmatpush1.bf16.msra.mxu0 0
  %1105 = vmatprep.subr.bf16.mxu0 0
  %1106 = vmatpush1.bf16.msra.mxu0 0
  %1107 = vmatprep.mubr.bf16.mxu0 %v1028
  %1108 = vmatmul.mubr.bf16.gmra.mrb[0].mxu0 %v887
  %v1109 = vpop.f32.mrb[0].mxu0
  %v1110 = vadd.f32 0.0, %v1109
  %v1111 = vpop.f32.mrb[0].mxu0
  %v1112 = vadd.f32 0.0, %v1111
  %v1113 = vpop.f32.mrb[0].mxu0
  %v1114 = vadd.f32 0.0, %v1113
  %v1115 = vpop.f32.mrb[0].mxu0
  %v1116 = vadd.f32 0.0, %v1115
  %1117 = vmatprep.mubr.bf16.mxu0 %v1031
  %1118 = vmatmul.mubr.bf16.gmra.mrb[0].mxu0 %v889
  %v1119 = vpop.f32.mrb[0].mxu0
  %v1120 = vadd.f32 0.0, %v1119
  %v1121 = vpop.f32.mrb[0].mxu0
  %v1122 = vadd.f32 0.0, %v1121
  %v1123 = vpop.f32.mrb[0].mxu0
  %v1124 = vadd.f32 0.0, %v1123
  %v1125 = vpop.f32.mrb[0].mxu0
  %v1126 = vadd.f32 0.0, %v1125
  %1127 = vmatprep.mubr.bf16.mxu0 %v1034
  %1128 = vmatmul.mubr.bf16.gmra.mrb[0].mxu0 %v891
  %v1129 = vpop.f32.mrb[0].mxu0
  %v1130 = vadd.f32 0.0, %v1129
  %v1131 = vpop.f32.mrb[0].mxu0
  %v1132 = vadd.f32 0.0, %v1131
  %v1133 = vpop.f32.mrb[0].mxu0
  %v1134 = vadd.f32 0.0, %v1133
  %v1135 = vpop.f32.mrb[0].mxu0
  %v1136 = vadd.f32 0.0, %v1135
  %1137 = vmatprep.mubr.bf16.mxu0 %v1037
  %1138 = vmatmul.mubr.bf16.gmra.mrb[0].mxu0 %v893
  %v1139 = vpop.f32.mrb[0].mxu0
  %v1140 = vadd.f32 0.0, %v1139
  %v1141 = vpop.f32.mrb[0].mxu0
  %v1142 = vadd.f32 0.0, %v1141
  %v1143 = vpop.f32.mrb[0].mxu0
  %v1144 = vadd.f32 0.0, %v1143
  %v1145 = vpop.f32.mrb[0].mxu0
  %v1146 = vadd.f32 0.0, %v1145
  %1147 = vmatprep.mubr.bf16.mxu0 %v1040
  %1148 = vmatmul.mubr.bf16.gmra.mrb[0].mxu0 %v895
  %v1149 = vpop.f32.mrb[0].mxu0
  %v1150 = vadd.f32 0.0, %v1149
  %v1151 = vpop.f32.mrb[0].mxu0
  %v1152 = vadd.f32 0.0, %v1151
  %v1153 = vpop.f32.mrb[0].mxu0
  %v1154 = vadd.f32 0.0, %v1153
  %v1155 = vpop.f32.mrb[0].mxu0
  %v1156 = vadd.f32 0.0, %v1155
  %1157 = vmatprep.mubr.bf16.mxu0 %v1043
  %1158 = vmatmul.mubr.bf16.gmra.mrb[0].mxu0 %v897
  %v1159 = vpop.f32.mrb[0].mxu0
  %v1160 = vadd.f32 0.0, %v1159
  %v1161 = vpop.f32.mrb[0].mxu0
  %v1162 = vadd.f32 0.0, %v1161
  %v1163 = vpop.f32.mrb[0].mxu0
  %v1164 = vadd.f32 0.0, %v1163
  %v1165 = vpop.f32.mrb[0].mxu0
  %v1166 = vadd.f32 0.0, %v1165
  %1167 = vmatprep.mubr.bf16.mxu0 %v1046
  %1168 = vmatmul.mubr.bf16.gmra.mrb[0].mxu0 %v899
  %v1169 = vpop.f32.mrb[0].mxu0
  %v1170 = vadd.f32 0.0, %v1169
  %v1171 = vpop.f32.mrb[0].mxu0
  %v1172 = vadd.f32 0.0, %v1171
  %v1173 = vpop.f32.mrb[0].mxu0
  %v1174 = vadd.f32 0.0, %v1173
  %v1175 = vpop.f32.mrb[0].mxu0
  %v1176 = vadd.f32 0.0, %v1175
  %1177 = vmatprep.mubr.bf16.mxu0 %v1049
  %1178 = vmatmul.mubr.bf16.gmra.mrb[0].mxu0 %v901
  %v1179 = vpop.f32.mrb[0].mxu0
  %v1180 = vadd.f32 0.0, %v1179
  %v1181 = vpop.f32.mrb[0].mxu0
  %v1182 = vadd.f32 0.0, %v1181
  %v1183 = vpop.f32.mrb[0].mxu0
  %v1184 = vadd.f32 0.0, %v1183
  %v1185 = vpop.f32.mrb[0].mxu0
  %v1186 = vadd.f32 0.0, %v1185
  %1187 = vmatprep.mubr.bf16.mxu0 %v1052
  %1188 = vmatmul.mubr.bf16.gmra.mrb[0].mxu0 %v903
  %v1189 = vpop.f32.mrb[0].mxu0
  %v1190 = vadd.f32 0.0, %v1189
  %v1191 = vpop.f32.mrb[0].mxu0
  %v1192 = vadd.f32 0.0, %v1191
  %v1193 = vpop.f32.mrb[0].mxu0
  %v1194 = vadd.f32 0.0, %v1193
  %v1195 = vpop.f32.mrb[0].mxu0
  %v1196 = vadd.f32 0.0, %v1195
  %1197 = vmatprep.mubr.bf16.mxu0 %v1055
  %1198 = vmatmul.mubr.bf16.gmra.mrb[0].mxu0 %v905
  %v1199 = vpop.f32.mrb[0].mxu0
  %v1200 = vadd.f32 0.0, %v1199
  %v1201 = vpop.f32.mrb[0].mxu0
  %v1202 = vadd.f32 0.0, %v1201
  %v1203 = vpop.f32.mrb[0].mxu0
  %v1204 = vadd.f32 0.0, %v1203
  %v1205 = vpop.f32.mrb[0].mxu0
  %v1206 = vadd.f32 0.0, %v1205
  %1207 = vmatprep.mubr.bf16.mxu0 %v1058
  %1208 = vmatmul.mubr.bf16.gmra.mrb[0].mxu0 %v907
  %v1209 = vpop.f32.mrb[0].mxu0
  %v1210 = vadd.f32 0.0, %v1209
  %v1211 = vpop.f32.mrb[0].mxu0
  %v1212 = vadd.f32 0.0, %v1211
  %v1213 = vpop.f32.mrb[0].mxu0
  %v1214 = vadd.f32 0.0, %v1213
  %v1215 = vpop.f32.mrb[0].mxu0
  %v1216 = vadd.f32 0.0, %v1215
  %1217 = vmatprep.mubr.bf16.mxu0 %v1061
  %1218 = vmatmul.mubr.bf16.gmra.mrb[0].mxu0 %v909
  %v1219 = vpop.f32.mrb[0].mxu0
  %v1220 = vadd.f32 0.0, %v1219
  %v1221 = vpop.f32.mrb[0].mxu0
  %v1222 = vadd.f32 0.0, %v1221
  %v1223 = vpop.f32.mrb[0].mxu0
  %v1224 = vadd.f32 0.0, %v1223
  %v1225 = vpop.f32.mrb[0].mxu0
  %v1226 = vadd.f32 0.0, %v1225
  %1227 = vmatprep.mubr.bf16.mxu0 %v1064
  %1228 = vmatmul.mubr.bf16.gmra.mrb[0].mxu0 %v911
  %v1229 = vpop.f32.mrb[0].mxu0
  %v1230 = vadd.f32 0.0, %v1229
  %v1231 = vpop.f32.mrb[0].mxu0
  %v1232 = vadd.f32 0.0, %v1231
  %v1233 = vpop.f32.mrb[0].mxu0
  %v1234 = vadd.f32 0.0, %v1233
  %v1235 = vpop.f32.mrb[0].mxu0
  %v1236 = vadd.f32 0.0, %v1235
  %1237 = vmatprep.mubr.bf16.mxu0 %v1067
  %1238 = vmatmul.mubr.bf16.gmra.mrb[0].mxu0 %v913
  %v1239 = vpop.f32.mrb[0].mxu0
  %v1240 = vadd.f32 0.0, %v1239
  %v1241 = vpop.f32.mrb[0].mxu0
  %v1242 = vadd.f32 0.0, %v1241
  %v1243 = vpop.f32.mrb[0].mxu0
  %v1244 = vadd.f32 0.0, %v1243
  %v1245 = vpop.f32.mrb[0].mxu0
  %v1246 = vadd.f32 0.0, %v1245
  %1247 = vmatprep.mubr.bf16.mxu0 %v1070
  %1248 = vmatmul.mubr.bf16.gmra.mrb[0].mxu0 %v915
  %v1249 = vpop.f32.mrb[0].mxu0
  %v1250 = vadd.f32 0.0, %v1249
  %v1251 = vpop.f32.mrb[0].mxu0
  %v1252 = vadd.f32 0.0, %v1251
  %v1253 = vpop.f32.mrb[0].mxu0
  %v1254 = vadd.f32 0.0, %v1253
  %v1255 = vpop.f32.mrb[0].mxu0
  %v1256 = vadd.f32 0.0, %v1255
  %1257 = vmatprep.mubr.bf16.mxu0 %v1073
  %1258 = vmatmul.mubr.bf16.gmra.mrb[0].mxu0 %v917
  %v1259 = vpop.f32.mrb[0].mxu0
  %v1260 = vadd.f32 0.0, %v1259
  %v1261 = vpop.f32.mrb[0].mxu0
  %v1262 = vadd.f32 0.0, %v1261
  %v1263 = vpop.f32.mrb[0].mxu0
  %v1264 = vadd.f32 0.0, %v1263
  %v1265 = vpop.f32.mrb[0].mxu0
  %v1266 = vadd.f32 0.0, %v1265
  %1267 = vdwg.mxu0
  %v1268 = vmax.f32 %v1110, 0.0
  %v1269 = vmax.f32 %v1112, 0.0
  %v1270 = vmax.f32 %v1114, 0.0
  %v1271 = vmax.f32 %v1116, 0.0
  %v1272 = vmax.f32 %v1120, 0.0
  %v1273 = vmax.f32 %v1122, 0.0
  %v1274 = vmax.f32 %v1124, 0.0
  %v1275 = vmax.f32 %v1126, 0.0
  %v1276 = vmax.f32 %v1130, 0.0
  %v1277 = vmax.f32 %v1132, 0.0
  %v1278 = vmax.f32 %v1134, 0.0
  %v1279 = vmax.f32 %v1136, 0.0
  %v1280 = vmax.f32 %v1140, 0.0
  %v1281 = vmax.f32 %v1142, 0.0
  %v1282 = vmax.f32 %v1144, 0.0
  %v1283 = vmax.f32 %v1146, 0.0
  %v1284 = vmax.f32 %v1150, 0.0
  %v1285 = vmax.f32 %v1152, 0.0
  %v1286 = vmax.f32 %v1154, 0.0
  %v1287 = vmax.f32 %v1156, 0.0
  %v1288 = vmax.f32 %v1160, 0.0
  %v1289 = vmax.f32 %v1162, 0.0
  %v1290 = vmax.f32 %v1164, 0.0
  %v1291 = vmax.f32 %v1166, 0.0
  %v1292 = vmax.f32 %v1170, 0.0
  %v1293 = vmax.f32 %v1172, 0.0
  %v1294 = vmax.f32 %v1174, 0.0
  %v1295 = vmax.f32 %v1176, 0.0
  %v1296 = vmax.f32 %v1180, 0.0
  %v1297 = vmax.f32 %v1182, 0.0
  %v1298 = vmax.f32 %v1184, 0.0
  %v1299 = vmax.f32 %v1186, 0.0
  %v1300 = vmax.f32 %v1190, 0.0
  %v1301 = vmax.f32 %v1192, 0.0
  %v1302 = vmax.f32 %v1194, 0.0
  %v1303 = vmax.f32 %v1196, 0.0
  %v1304 = vmax.f32 %v1200, 0.0
  %v1305 = vmax.f32 %v1202, 0.0
  %v1306 = vmax.f32 %v1204, 0.0
  %v1307 = vmax.f32 %v1206, 0.0
  %v1308 = vmax.f32 %v1210, 0.0
  %v1309 = vmax.f32 %v1212, 0.0
  %v1310 = vmax.f32 %v1214, 0.0
  %v1311 = vmax.f32 %v1216, 0.0
  %v1312 = vmax.f32 %v1220, 0.0
  %v1313 = vmax.f32 %v1222, 0.0
  %v1314 = vmax.f32 %v1224, 0.0
  %v1315 = vmax.f32 %v1226, 0.0
  %v1316 = vmax.f32 %v1230, 0.0
  %v1317 = vmax.f32 %v1232, 0.0
  %v1318 = vmax.f32 %v1234, 0.0
  %v1319 = vmax.f32 %v1236, 0.0
  %v1320 = vmax.f32 %v1240, 0.0
  %v1321 = vmax.f32 %v1242, 0.0
  %v1322 = vmax.f32 %v1244, 0.0
  %v1323 = vmax.f32 %v1246, 0.0
  %v1324 = vmax.f32 %v1250, 0.0
  %v1325 = vmax.f32 %v1252, 0.0
  %v1326 = vmax.f32 %v1254, 0.0
  %v1327 = vmax.f32 %v1256, 0.0
  %v1328 = vmax.f32 %v1260, 0.0
  %v1329 = vmax.f32 %v1262, 0.0
  %v1330 = vmax.f32 %v1264, 0.0
  %v1331 = vmax.f32 %v1266, 0.0
  %v1332 = vpack.c.bf16 %v1270, %v1268
  %v1333 = vpack.c.bf16 %v1271, %v1269
  %v1334 = vpack.c.bf16 %v1274, %v1272
  %v1335 = vpack.c.bf16 %v1275, %v1273
  %v1336 = vpack.c.bf16 %v1278, %v1276
  %v1337 = vpack.c.bf16 %v1279, %v1277
  %v1338 = vpack.c.bf16 %v1282, %v1280
  %v1339 = vpack.c.bf16 %v1283, %v1281
  %v1340 = vpack.c.bf16 %v1286, %v1284
  %v1341 = vpack.c.bf16 %v1287, %v1285
  %v1342 = vpack.c.bf16 %v1290, %v1288
  %v1343 = vpack.c.bf16 %v1291, %v1289
  %v1344 = vpack.c.bf16 %v1294, %v1292
  %v1345 = vpack.c.bf16 %v1295, %v1293
  %v1346 = vpack.c.bf16 %v1298, %v1296
  %v1347 = vpack.c.bf16 %v1299, %v1297
  %v1348 = vpack.c.bf16 %v1302, %v1300
  %v1349 = vpack.c.bf16 %v1303, %v1301
  %v1350 = vpack.c.bf16 %v1306, %v1304
  %v1351 = vpack.c.bf16 %v1307, %v1305
  %v1352 = vpack.c.bf16 %v1310, %v1308
  %v1353 = vpack.c.bf16 %v1311, %v1309
  %v1354 = vpack.c.bf16 %v1314, %v1312
  %v1355 = vpack.c.bf16 %v1315, %v1313
  %v1356 = vpack.c.bf16 %v1318, %v1316
  %v1357 = vpack.c.bf16 %v1319, %v1317
  %v1358 = vpack.c.bf16 %v1322, %v1320
  %v1359 = vpack.c.bf16 %v1323, %v1321
  %v1360 = vpack.c.bf16 %v1326, %v1324
  %v1361 = vpack.c.bf16 %v1327, %v1325
  %v1362 = vpack.c.bf16 %v1330, %v1328
  %v1363 = vpack.c.bf16 %v1331, %v1329
  %s1364 = scalar_lea.vmem %s4, 144
  %v1365 = vld [vmem:[%s1364] sm:$0xff]
  %v1366 = vld [vmem:[%s1364 + $0x8] sm:$0xff]
  %v1367 = vld [vmem:[%s1364 + $0x10] sm:$0xff]
  %v1368 = vld [vmem:[%s1364 + $0x18] sm:$0xff]
  %v1369 = vld [vmem:[%s1364 + $0x20] sm:$0xff]
  %v1370 = vld [vmem:[%s1364 + $0x28] sm:$0xff]
  %v1371 = vld [vmem:[%s1364 + $0x30] sm:$0xff]
  %v1372 = vld [vmem:[%s1364 + $0x38] sm:$0xff]
  %v1373 = vld [vmem:[%s1364 + $0x40] sm:$0xff]
  %v1374 = vld [vmem:[%s1364 + $0x48] sm:$0xff]
  %v1375 = vld [vmem:[%s1364 + $0x50] sm:$0xff]
  %v1376 = vld [vmem:[%s1364 + $0x58] sm:$0xff]
  %v1377 = vld [vmem:[%s1364 + $0x60] sm:$0xff]
  %v1378 = vld [vmem:[%s1364 + $0x68] sm:$0xff]
  %v1379 = vld [vmem:[%s1364 + $0x70] sm:$0xff]
  %v1380 = vld [vmem:[%s1364 + $0x78] sm:$0xff]
  %v1381 = vld [vmem:[%s1364 + $0x80] sm:$0xff]
  %v1382 = vld [vmem:[%s1364 + $0x88] sm:$0xff]
  %v1401 = vunpack.c.l.b16 %v1365
  %v1402 = vunpack.c.h.b16 %v1365
  %v1403 = vunpack.c.l.b16 %v1366
  %v1404 = vunpack.c.h.b16 %v1366
  %v1405 = vunpack.c.l.b16 %v1367
  %v1406 = vunpack.c.h.b16 %v1367
  %v1407 = vunpack.c.l.b16 %v1368
  %v1408 = vunpack.c.h.b16 %v1368
  %v1409 = vunpack.c.l.b16 %v1369
  %v1410 = vunpack.c.h.b16 %v1369
  %v1411 = vunpack.c.l.b16 %v1370
  %v1412 = vunpack.c.h.b16 %v1370
  %v1413 = vunpack.c.l.b16 %v1371
  %v1414 = vunpack.c.h.b16 %v1371
  %v1415 = vunpack.c.l.b16 %v1372
  %v1416 = vunpack.c.h.b16 %v1372
  %v1417 = vunpack.c.l.b16 %v1373
  %v1418 = vunpack.c.h.b16 %v1373
  %v1419 = vunpack.c.l.b16 %v1374
  %v1420 = vunpack.c.h.b16 %v1374
  %v1421 = vunpack.c.l.b16 %v1375
  %v1422 = vunpack.c.h.b16 %v1375
  %v1423 = vunpack.c.l.b16 %v1376
  %v1424 = vunpack.c.h.b16 %v1376
  %v1425 = vunpack.c.l.b16 %v1377
  %v1426 = vunpack.c.h.b16 %v1377
  %v1427 = vunpack.c.l.b16 %v1378
  %v1428 = vunpack.c.h.b16 %v1378
  %v1429 = vunpack.c.l.b16 %v1379
  %v1430 = vunpack.c.h.b16 %v1379
  %v1431 = vunpack.c.l.b16 %v1380
  %v1432 = vunpack.c.h.b16 %v1380
  %v1433 = vunpack.c.l.b16 %v1381
  %v1434 = vunpack.c.h.b16 %v1381
  %v1435 = vunpack.c.l.b16 %v1382
  %v1436 = vunpack.c.h.b16 %v1382
  %v1437 = vpack.c.b16 %v1403, %v1401
  %v1438 = vpack.c.b16 %v1404, %v1402
  %v1439 = vpack.c.b16 %v1407, %v1405
  %v1440 = vpack.c.b16 %v1408, %v1406
  %v1441 = vpack.c.b16 %v1411, %v1409
  %v1442 = vpack.c.b16 %v1412, %v1410
  %v1443 = vpack.c.b16 %v1415, %v1413
  %v1444 = vpack.c.b16 %v1416, %v1414
  %v1445 = vpack.c.b16 %v1419, %v1417
  %v1446 = vpack.c.b16 %v1420, %v1418
  %v1447 = vpack.c.b16 %v1423, %v1421
  %v1448 = vpack.c.b16 %v1424, %v1422
  %v1449 = vpack.c.b16 %v1427, %v1425
  %v1450 = vpack.c.b16 %v1428, %v1426
  %v1451 = vpack.c.b16 %v1431, %v1429
  %v1452 = vpack.c.b16 %v1432, %v1430
  %v1453 = vpack.c.b16 %v1435, %v1433
  %v1454 = vpack.c.b16 %v1436, %v1434
  %v1474 = vsel %vm327, %v1333, 0
  %v1477 = vsel %vm327, %v1335, 0
  %v1480 = vsel %vm327, %v1337, 0
  %v1483 = vsel %vm327, %v1339, 0
  %v1486 = vsel %vm327, %v1341, 0
  %v1489 = vsel %vm327, %v1343, 0
  %v1492 = vsel %vm327, %v1345, 0
  %v1495 = vsel %vm327, %v1347, 0
  %v1498 = vsel %vm327, %v1349, 0
  %v1501 = vsel %vm327, %v1351, 0
  %v1504 = vsel %vm327, %v1353, 0
  %v1507 = vsel %vm327, %v1355, 0
  %v1510 = vsel %vm327, %v1357, 0
  %v1513 = vsel %vm327, %v1359, 0
  %v1516 = vsel %vm327, %v1361, 0
  %v1519 = vsel %vm327, %v1363, 0
  %1521 = vmatprep.subr.bf16.mxu0 %v1438
  %1522 = vmatpush1.bf16.msra.mxu0 %v1437
  %1523 = vmatprep.subr.bf16.mxu0 %v1440
  %1524 = vmatpush1.bf16.msra.mxu0 %v1439
  %1525 = vmatprep.subr.bf16.mxu0 %v1442
  %1526 = vmatpush1.bf16.msra.mxu0 %v1441
  %1527 = vmatprep.subr.bf16.mxu0 %v1444
  %1528 = vmatpush1.bf16.msra.mxu0 %v1443
  %1529 = vmatprep.subr.bf16.mxu0 %v1446
  %1530 = vmatpush1.bf16.msra.mxu0 %v1445
  %1531 = vmatprep.subr.bf16.mxu0 %v1448
  %1532 = vmatpush1.bf16.msra.mxu0 %v1447
  %1533 = vmatprep.subr.bf16.mxu0 %v1450
  %1534 = vmatpush1.bf16.msra.mxu0 %v1449
  %1535 = vmatprep.subr.bf16.mxu0 %v1452
  %1536 = vmatpush1.bf16.msra.mxu0 %v1451
  %1537 = vmatprep.subr.bf16.mxu0 %v1454
  %1538 = vmatpush1.bf16.msra.mxu0 %v1453
  %1539 = vmatprep.subr.bf16.mxu0 0
  %1540 = vmatpush1.bf16.msra.mxu0 0
  %1541 = vmatprep.subr.bf16.mxu0 0
  %1542 = vmatpush1.bf16.msra.mxu0 0
  %1543 = vmatprep.subr.bf16.mxu0 0
  %1544 = vmatpush1.bf16.msra.mxu0 0
  %1545 = vmatprep.subr.bf16.mxu0 0
  %1546 = vmatpush1.bf16.msra.mxu0 0
  %1547 = vmatprep.subr.bf16.mxu0 0
  %1548 = vmatpush1.bf16.msra.mxu0 0
  %1549 = vmatprep.subr.bf16.mxu0 0
  %1550 = vmatpush1.bf16.msra.mxu0 0
  %1551 = vmatprep.subr.bf16.mxu0 0
  %1552 = vmatpush1.bf16.msra.mxu0 0
  %1553 = vmatprep.mubr.bf16.mxu0 %v1474
  %1554 = vmatmul.mubr.bf16.gmra.mrb[0].mxu0 %v1332
  %v1555 = vpop.f32.mrb[0].mxu0
  %v1556 = vadd.f32 0.0, %v1555
  %v1557 = vpop.f32.mrb[0].mxu0
  %v1558 = vadd.f32 0.0, %v1557
  %v1559 = vpop.f32.mrb[0].mxu0
  %v1560 = vadd.f32 0.0, %v1559
  %v1561 = vpop.f32.mrb[0].mxu0
  %v1562 = vadd.f32 0.0, %v1561
  %1563 = vmatprep.mubr.bf16.mxu0 %v1477
  %1564 = vmatmul.mubr.bf16.gmra.mrb[0].mxu0 %v1334
  %v1565 = vpop.f32.mrb[0].mxu0
  %v1566 = vadd.f32 0.0, %v1565
  %v1567 = vpop.f32.mrb[0].mxu0
  %v1568 = vadd.f32 0.0, %v1567
  %v1569 = vpop.f32.mrb[0].mxu0
  %v1570 = vadd.f32 0.0, %v1569
  %v1571 = vpop.f32.mrb[0].mxu0
  %v1572 = vadd.f32 0.0, %v1571
  %1573 = vmatprep.mubr.bf16.mxu0 %v1480
  %1574 = vmatmul.mubr.bf16.gmra.mrb[0].mxu0 %v1336
  %v1575 = vpop.f32.mrb[0].mxu0
  %v1576 = vadd.f32 0.0, %v1575
  %v1577 = vpop.f32.mrb[0].mxu0
  %v1578 = vadd.f32 0.0, %v1577
  %v1579 = vpop.f32.mrb[0].mxu0
  %v1580 = vadd.f32 0.0, %v1579
  %v1581 = vpop.f32.mrb[0].mxu0
  %v1582 = vadd.f32 0.0, %v1581
  %1583 = vmatprep.mubr.bf16.mxu0 %v1483
  %1584 = vmatmul.mubr.bf16.gmra.mrb[0].mxu0 %v1338
  %v1585 = vpop.f32.mrb[0].mxu0
  %v1586 = vadd.f32 0.0, %v1585
  %v1587 = vpop.f32.mrb[0].mxu0
  %v1588 = vadd.f32 0.0, %v1587
  %v1589 = vpop.f32.mrb[0].mxu0
  %v1590 = vadd.f32 0.0, %v1589
  %v1591 = vpop.f32.mrb[0].mxu0
  %v1592 = vadd.f32 0.0, %v1591
  %1593 = vmatprep.mubr.bf16.mxu0 %v1486
  %1594 = vmatmul.mubr.bf16.gmra.mrb[0].mxu0 %v1340
  %v1595 = vpop.f32.mrb[0].mxu0
  %v1596 = vadd.f32 0.0, %v1595
  %v1597 = vpop.f32.mrb[0].mxu0
  %v1598 = vadd.f32 0.0, %v1597
  %v1599 = vpop.f32.mrb[0].mxu0
  %v1600 = vadd.f32 0.0, %v1599
  %v1601 = vpop.f32.mrb[0].mxu0
  %v1602 = vadd.f32 0.0, %v1601
  %1603 = vmatprep.mubr.bf16.mxu0 %v1489
  %1604 = vmatmul.mubr.bf16.gmra.mrb[0].mxu0 %v1342
  %v1605 = vpop.f32.mrb[0].mxu0
  %v1606 = vadd.f32 0.0, %v1605
  %v1607 = vpop.f32.mrb[0].mxu0
  %v1608 = vadd.f32 0.0, %v1607
  %v1609 = vpop.f32.mrb[0].mxu0
  %v1610 = vadd.f32 0.0, %v1609
  %v1611 = vpop.f32.mrb[0].mxu0
  %v1612 = vadd.f32 0.0, %v1611
  %1613 = vmatprep.mubr.bf16.mxu0 %v1492
  %1614 = vmatmul.mubr.bf16.gmra.mrb[0].mxu0 %v1344
  %v1615 = vpop.f32.mrb[0].mxu0
  %v1616 = vadd.f32 0.0, %v1615
  %v1617 = vpop.f32.mrb[0].mxu0
  %v1618 = vadd.f32 0.0, %v1617
  %v1619 = vpop.f32.mrb[0].mxu0
  %v1620 = vadd.f32 0.0, %v1619
  %v1621 = vpop.f32.mrb[0].mxu0
  %v1622 = vadd.f32 0.0, %v1621
  %1623 = vmatprep.mubr.bf16.mxu0 %v1495
  %1624 = vmatmul.mubr.bf16.gmra.mrb[0].mxu0 %v1346
  %v1625 = vpop.f32.mrb[0].mxu0
  %v1626 = vadd.f32 0.0, %v1625
  %v1627 = vpop.f32.mrb[0].mxu0
  %v1628 = vadd.f32 0.0, %v1627
  %v1629 = vpop.f32.mrb[0].mxu0
  %v1630 = vadd.f32 0.0, %v1629
  %v1631 = vpop.f32.mrb[0].mxu0
  %v1632 = vadd.f32 0.0, %v1631
  %1633 = vmatprep.mubr.bf16.mxu0 %v1498
  %1634 = vmatmul.mubr.bf16.gmra.mrb[0].mxu0 %v1348
  %v1635 = vpop.f32.mrb[0].mxu0
  %v1636 = vadd.f32 0.0, %v1635
  %v1637 = vpop.f32.mrb[0].mxu0
  %v1638 = vadd.f32 0.0, %v1637
  %v1639 = vpop.f32.mrb[0].mxu0
  %v1640 = vadd.f32 0.0, %v1639
  %v1641 = vpop.f32.mrb[0].mxu0
  %v1642 = vadd.f32 0.0, %v1641
  %1643 = vmatprep.mubr.bf16.mxu0 %v1501
  %1644 = vmatmul.mubr.bf16.gmra.mrb[0].mxu0 %v1350
  %v1645 = vpop.f32.mrb[0].mxu0
  %v1646 = vadd.f32 0.0, %v1645
  %v1647 = vpop.f32.mrb[0].mxu0
  %v1648 = vadd.f32 0.0, %v1647
  %v1649 = vpop.f32.mrb[0].mxu0
  %v1650 = vadd.f32 0.0, %v1649
  %v1651 = vpop.f32.mrb[0].mxu0
  %v1652 = vadd.f32 0.0, %v1651
  %1653 = vmatprep.mubr.bf16.mxu0 %v1504
  %1654 = vmatmul.mubr.bf16.gmra.mrb[0].mxu0 %v1352
  %v1655 = vpop.f32.mrb[0].mxu0
  %v1656 = vadd.f32 0.0, %v1655
  %v1657 = vpop.f32.mrb[0].mxu0
  %v1658 = vadd.f32 0.0, %v1657
  %v1659 = vpop.f32.mrb[0].mxu0
  %v1660 = vadd.f32 0.0, %v1659
  %v1661 = vpop.f32.mrb[0].mxu0
  %v1662 = vadd.f32 0.0, %v1661
  %1663 = vmatprep.mubr.bf16.mxu0 %v1507
  %1664 = vmatmul.mubr.bf16.gmra.mrb[0].mxu0 %v1354
  %v1665 = vpop.f32.mrb[0].mxu0
  %v1666 = vadd.f32 0.0, %v1665
  %v1667 = vpop.f32.mrb[0].mxu0
  %v1668 = vadd.f32 0.0, %v1667
  %v1669 = vpop.f32.mrb[0].mxu0
  %v1670 = vadd.f32 0.0, %v1669
  %v1671 = vpop.f32.mrb[0].mxu0
  %v1672 = vadd.f32 0.0, %v1671
  %1673 = vmatprep.mubr.bf16.mxu0 %v1510
  %1674 = vmatmul.mubr.bf16.gmra.mrb[0].mxu0 %v1356
  %v1675 = vpop.f32.mrb[0].mxu0
  %v1676 = vadd.f32 0.0, %v1675
  %v1677 = vpop.f32.mrb[0].mxu0
  %v1678 = vadd.f32 0.0, %v1677
  %v1679 = vpop.f32.mrb[0].mxu0
  %v1680 = vadd.f32 0.0, %v1679
  %v1681 = vpop.f32.mrb[0].mxu0
  %v1682 = vadd.f32 0.0, %v1681
  %1683 = vmatprep.mubr.bf16.mxu0 %v1513
  %1684 = vmatmul.mubr.bf16.gmra.mrb[0].mxu0 %v1358
  %v1685 = vpop.f32.mrb[0].mxu0
  %v1686 = vadd.f32 0.0, %v1685
  %v1687 = vpop.f32.mrb[0].mxu0
  %v1688 = vadd.f32 0.0, %v1687
  %v1689 = vpop.f32.mrb[0].mxu0
  %v1690 = vadd.f32 0.0, %v1689
  %v1691 = vpop.f32.mrb[0].mxu0
  %v1692 = vadd.f32 0.0, %v1691
  %1693 = vmatprep.mubr.bf16.mxu0 %v1516
  %1694 = vmatmul.mubr.bf16.gmra.mrb[0].mxu0 %v1360
  %v1695 = vpop.f32.mrb[0].mxu0
  %v1696 = vadd.f32 0.0, %v1695
  %v1697 = vpop.f32.mrb[0].mxu0
  %v1698 = vadd.f32 0.0, %v1697
  %v1699 = vpop.f32.mrb[0].mxu0
  %v1700 = vadd.f32 0.0, %v1699
  %v1701 = vpop.f32.mrb[0].mxu0
  %v1702 = vadd.f32 0.0, %v1701
  %1703 = vmatprep.mubr.bf16.mxu0 %v1519
  %1704 = vmatmul.mubr.bf16.gmra.mrb[0].mxu0 %v1362
  %v1705 = vpop.f32.mrb[0].mxu0
  %v1706 = vadd.f32 0.0, %v1705
  %v1707 = vpop.f32.mrb[0].mxu0
  %v1708 = vadd.f32 0.0, %v1707
  %v1709 = vpop.f32.mrb[0].mxu0
  %v1710 = vadd.f32 0.0, %v1709
  %v1711 = vpop.f32.mrb[0].mxu0
  %v1712 = vadd.f32 0.0, %v1711
  %1713 = vdwg.mxu0
  %v1714 = vmax.f32 %v1556, 0.0
  %v1715 = vmax.f32 %v1558, 0.0
  %v1716 = vmax.f32 %v1560, 0.0
  %v1717 = vmax.f32 %v1562, 0.0
  %v1718 = vmax.f32 %v1566, 0.0
  %v1719 = vmax.f32 %v1568, 0.0
  %v1720 = vmax.f32 %v1570, 0.0
  %v1721 = vmax.f32 %v1572, 0.0
  %v1722 = vmax.f32 %v1576, 0.0
  %v1723 = vmax.f32 %v1578, 0.0
  %v1724 = vmax.f32 %v1580, 0.0
  %v1725 = vmax.f32 %v1582, 0.0
  %v1726 = vmax.f32 %v1586, 0.0
  %v1727 = vmax.f32 %v1588, 0.0
  %v1728 = vmax.f32 %v1590, 0.0
  %v1729 = vmax.f32 %v1592, 0.0
  %v1730 = vmax.f32 %v1596, 0.0
  %v1731 = vmax.f32 %v1598, 0.0
  %v1732 = vmax.f32 %v1600, 0.0
  %v1733 = vmax.f32 %v1602, 0.0
  %v1734 = vmax.f32 %v1606, 0.0
  %v1735 = vmax.f32 %v1608, 0.0
  %v1736 = vmax.f32 %v1610, 0.0
  %v1737 = vmax.f32 %v1612, 0.0
  %v1738 = vmax.f32 %v1616, 0.0
  %v1739 = vmax.f32 %v1618, 0.0
  %v1740 = vmax.f32 %v1620, 0.0
  %v1741 = vmax.f32 %v1622, 0.0
  %v1742 = vmax.f32 %v1626, 0.0
  %v1743 = vmax.f32 %v1628, 0.0
  %v1744 = vmax.f32 %v1630, 0.0
  %v1745 = vmax.f32 %v1632, 0.0
  %v1746 = vmax.f32 %v1636, 0.0
  %v1747 = vmax.f32 %v1638, 0.0
  %v1748 = vmax.f32 %v1640, 0.0
  %v1749 = vmax.f32 %v1642, 0.0
  %v1750 = vmax.f32 %v1646, 0.0
  %v1751 = vmax.f32 %v1648, 0.0
  %v1752 = vmax.f32 %v1650, 0.0
  %v1753 = vmax.f32 %v1652, 0.0
  %v1754 = vmax.f32 %v1656, 0.0
  %v1755 = vmax.f32 %v1658, 0.0
  %v1756 = vmax.f32 %v1660, 0.0
  %v1757 = vmax.f32 %v1662, 0.0
  %v1758 = vmax.f32 %v1666, 0.0
  %v1759 = vmax.f32 %v1668, 0.0
  %v1760 = vmax.f32 %v1670, 0.0
  %v1761 = vmax.f32 %v1672, 0.0
  %v1762 = vmax.f32 %v1676, 0.0
  %v1763 = vmax.f32 %v1678, 0.0
  %v1764 = vmax.f32 %v1680, 0.0
  %v1765 = vmax.f32 %v1682, 0.0
  %v1766 = vmax.f32 %v1686, 0.0
  %v1767 = vmax.f32 %v1688, 0.0
  %v1768 = vmax.f32 %v1690, 0.0
  %v1769 = vmax.f32 %v1692, 0.0
  %v1770 = vmax.f32 %v1696, 0.0
  %v1771 = vmax.f32 %v1698, 0.0
  %v1772 = vmax.f32 %v1700, 0.0
  %v1773 = vmax.f32 %v1702, 0.0
  %v1774 = vmax.f32 %v1706, 0.0
  %v1775 = vmax.f32 %v1708, 0.0
  %v1776 = vmax.f32 %v1710, 0.0
  %v1777 = vmax.f32 %v1712, 0.0
  %v1778 = vpack.c.bf16 %v1716, %v1714
  %v1779 = vpack.c.bf16 %v1717, %v1715
  %v1780 = vpack.c.bf16 %v1720, %v1718
  %v1781 = vpack.c.bf16 %v1721, %v1719
  %v1782 = vpack.c.bf16 %v1724, %v1722
  %v1783 = vpack.c.bf16 %v1725, %v1723
  %v1784 = vpack.c.bf16 %v1728, %v1726
  %v1785 = vpack.c.bf16 %v1729, %v1727
  %v1786 = vpack.c.bf16 %v1732, %v1730
  %v1787 = vpack.c.bf16 %v1733, %v1731
  %v1788 = vpack.c.bf16 %v1736, %v1734
  %v1789 = vpack.c.bf16 %v1737, %v1735
  %v1790 = vpack.c.bf16 %v1740, %v1738
  %v1791 = vpack.c.bf16 %v1741, %v1739
  %v1792 = vpack.c.bf16 %v1744, %v1742
  %v1793 = vpack.c.bf16 %v1745, %v1743
  %v1794 = vpack.c.bf16 %v1748, %v1746
  %v1795 = vpack.c.bf16 %v1749, %v1747
  %v1796 = vpack.c.bf16 %v1752, %v1750
  %v1797 = vpack.c.bf16 %v1753, %v1751
  %v1798 = vpack.c.bf16 %v1756, %v1754
  %v1799 = vpack.c.bf16 %v1757, %v1755
  %v1800 = vpack.c.bf16 %v1760, %v1758
  %v1801 = vpack.c.bf16 %v1761, %v1759
  %v1802 = vpack.c.bf16 %v1764, %v1762
  %v1803 = vpack.c.bf16 %v1765, %v1763
  %v1804 = vpack.c.bf16 %v1768, %v1766
  %v1805 = vpack.c.bf16 %v1769, %v1767
  %v1806 = vpack.c.bf16 %v1772, %v1770
  %v1807 = vpack.c.bf16 %v1773, %v1771
  %v1808 = vpack.c.bf16 %v1776, %v1774
  %v1809 = vpack.c.bf16 %v1777, %v1775
  %s1810 = scalar_lea.vmem %s4, 288
  %v1811 = vld [vmem:[%s1810] sm:$0xff]
  %v1812 = vld [vmem:[%s1810 + $0x8] sm:$0xff]
  %v1813 = vld [vmem:[%s1810 + $0x10] sm:$0xff]
  %v1814 = vld [vmem:[%s1810 + $0x18] sm:$0xff]
  %v1815 = vld [vmem:[%s1810 + $0x20] sm:$0xff]
  %v1816 = vld [vmem:[%s1810 + $0x28] sm:$0xff]
  %v1817 = vld [vmem:[%s1810 + $0x30] sm:$0xff]
  %v1818 = vld [vmem:[%s1810 + $0x38] sm:$0xff]
  %v1819 = vld [vmem:[%s1810 + $0x40] sm:$0xff]
  %v1820 = vld [vmem:[%s1810 + $0x48] sm:$0xff]
  %v1821 = vld [vmem:[%s1810 + $0x50] sm:$0xff]
  %v1822 = vld [vmem:[%s1810 + $0x58] sm:$0xff]
  %v1823 = vld [vmem:[%s1810 + $0x60] sm:$0xff]
  %v1824 = vld [vmem:[%s1810 + $0x68] sm:$0xff]
  %v1825 = vld [vmem:[%s1810 + $0x70] sm:$0xff]
  %v1826 = vld [vmem:[%s1810 + $0x78] sm:$0xff]
  %v1827 = vld [vmem:[%s1810 + $0x80] sm:$0xff]
  %v1828 = vld [vmem:[%s1810 + $0x88] sm:$0xff]
  %v1847 = vunpack.c.l.b16 %v1811
  %v1848 = vunpack.c.h.b16 %v1811
  %v1849 = vunpack.c.l.b16 %v1812
  %v1850 = vunpack.c.h.b16 %v1812
  %v1851 = vunpack.c.l.b16 %v1813
  %v1852 = vunpack.c.h.b16 %v1813
  %v1853 = vunpack.c.l.b16 %v1814
  %v1854 = vunpack.c.h.b16 %v1814
  %v1855 = vunpack.c.l.b16 %v1815
  %v1856 = vunpack.c.h.b16 %v1815
  %v1857 = vunpack.c.l.b16 %v1816
  %v1858 = vunpack.c.h.b16 %v1816
  %v1859 = vunpack.c.l.b16 %v1817
  %v1860 = vunpack.c.h.b16 %v1817
  %v1861 = vunpack.c.l.b16 %v1818
  %v1862 = vunpack.c.h.b16 %v1818
  %v1863 = vunpack.c.l.b16 %v1819
  %v1864 = vunpack.c.h.b16 %v1819
  %v1865 = vunpack.c.l.b16 %v1820
  %v1866 = vunpack.c.h.b16 %v1820
  %v1867 = vunpack.c.l.b16 %v1821
  %v1868 = vunpack.c.h.b16 %v1821
  %v1869 = vunpack.c.l.b16 %v1822
  %v1870 = vunpack.c.h.b16 %v1822
  %v1871 = vunpack.c.l.b16 %v1823
  %v1872 = vunpack.c.h.b16 %v1823
  %v1873 = vunpack.c.l.b16 %v1824
  %v1874 = vunpack.c.h.b16 %v1824
  %v1875 = vunpack.c.l.b16 %v1825
  %v1876 = vunpack.c.h.b16 %v1825
  %v1877 = vunpack.c.l.b16 %v1826
  %v1878 = vunpack.c.h.b16 %v1826
  %v1879 = vunpack.c.l.b16 %v1827
  %v1880 = vunpack.c.h.b16 %v1827
  %v1881 = vunpack.c.l.b16 %v1828
  %v1882 = vunpack.c.h.b16 %v1828
  %v1883 = vpack.c.b16 %v1849, %v1847
  %v1884 = vpack.c.b16 %v1850, %v1848
  %v1885 = vpack.c.b16 %v1853, %v1851
  %v1886 = vpack.c.b16 %v1854, %v1852
  %v1887 = vpack.c.b16 %v1857, %v1855
  %v1888 = vpack.c.b16 %v1858, %v1856
  %v1889 = vpack.c.b16 %v1861, %v1859
  %v1890 = vpack.c.b16 %v1862, %v1860
  %v1891 = vpack.c.b16 %v1865, %v1863
  %v1892 = vpack.c.b16 %v1866, %v1864
  %v1893 = vpack.c.b16 %v1869, %v1867
  %v1894 = vpack.c.b16 %v1870, %v1868
  %v1895 = vpack.c.b16 %v1873, %v1871
  %v1896 = vpack.c.b16 %v1874, %v1872
  %v1897 = vpack.c.b16 %v1877, %v1875
  %v1898 = vpack.c.b16 %v1878, %v1876
  %v1899 = vpack.c.b16 %v1881, %v1879
  %v1900 = vpack.c.b16 %v1882, %v1880
  %v1920 = vsel %vm327, %v1779, 0
  %v1923 = vsel %vm327, %v1781, 0
  %v1926 = vsel %vm327, %v1783, 0
  %v1929 = vsel %vm327, %v1785, 0
  %v1932 = vsel %vm327, %v1787, 0
  %v1935 = vsel %vm327, %v1789, 0
  %v1938 = vsel %vm327, %v1791, 0
  %v1941 = vsel %vm327, %v1793, 0
  %v1944 = vsel %vm327, %v1795, 0
  %v1947 = vsel %vm327, %v1797, 0
  %v1950 = vsel %vm327, %v1799, 0
  %v1953 = vsel %vm327, %v1801, 0
  %v1956 = vsel %vm327, %v1803, 0
  %v1959 = vsel %vm327, %v1805, 0
  %v1962 = vsel %vm327, %v1807, 0
  %v1965 = vsel %vm327, %v1809, 0
  %1967 = vmatprep.subr.bf16.mxu0 %v1884
  %1968 = vmatpush1.bf16.msra.mxu0 %v1883
  %1969 = vmatprep.subr.bf16.mxu0 %v1886
  %1970 = vmatpush1.bf16.msra.mxu0 %v1885
  %1971 = vmatprep.subr.bf16.mxu0 %v1888
  %1972 = vmatpush1.bf16.msra.mxu0 %v1887
  %1973 = vmatprep.subr.bf16.mxu0 %v1890
  %1974 = vmatpush1.bf16.msra.mxu0 %v1889
  %1975 = vmatprep.subr.bf16.mxu0 %v1892
  %1976 = vmatpush1.bf16.msra.mxu0 %v1891
  %1977 = vmatprep.subr.bf16.mxu0 %v1894
  %1978 = vmatpush1.bf16.msra.mxu0 %v1893
  %1979 = vmatprep.subr.bf16.mxu0 %v1896
  %1980 = vmatpush1.bf16.msra.mxu0 %v1895
  %1981 = vmatprep.subr.bf16.mxu0 %v1898
  %1982 = vmatpush1.bf16.msra.mxu0 %v1897
  %1983 = vmatprep.subr.bf16.mxu0 %v1900
  %1984 = vmatpush1.bf16.msra.mxu0 %v1899
  %1985 = vmatprep.subr.bf16.mxu0 0
  %1986 = vmatpush1.bf16.msra.mxu0 0
  %1987 = vmatprep.subr.bf16.mxu0 0
  %1988 = vmatpush1.bf16.msra.mxu0 0
  %1989 = vmatprep.subr.bf16.mxu0 0
  %1990 = vmatpush1.bf16.msra.mxu0 0
  %1991 = vmatprep.subr.bf16.mxu0 0
  %1992 = vmatpush1.bf16.msra.mxu0 0
  %1993 = vmatprep.subr.bf16.mxu0 0
  %1994 = vmatpush1.bf16.msra.mxu0 0
  %1995 = vmatprep.subr.bf16.mxu0 0
  %1996 = vmatpush1.bf16.msra.mxu0 0
  %1997 = vmatprep.subr.bf16.mxu0 0
  %1998 = vmatpush1.bf16.msra.mxu0 0
  %1999 = vmatprep.mubr.bf16.mxu0 %v1920
  %2000 = vmatmul.mubr.bf16.gmra.mrb[0].mxu0 %v1778
  %v2001 = vpop.f32.mrb[0].mxu0
  %v2002 = vadd.f32 0.0, %v2001
  %v2003 = vpop.f32.mrb[0].mxu0
  %v2004 = vadd.f32 0.0, %v2003
  %v2005 = vpop.f32.mrb[0].mxu0
  %v2006 = vadd.f32 0.0, %v2005
  %v2007 = vpop.f32.mrb[0].mxu0
  %v2008 = vadd.f32 0.0, %v2007
  %2009 = vmatprep.mubr.bf16.mxu0 %v1923
  %2010 = vmatmul.mubr.bf16.gmra.mrb[0].mxu0 %v1780
  %v2011 = vpop.f32.mrb[0].mxu0
  %v2012 = vadd.f32 0.0, %v2011
  %v2013 = vpop.f32.mrb[0].mxu0
  %v2014 = vadd.f32 0.0, %v2013
  %v2015 = vpop.f32.mrb[0].mxu0
  %v2016 = vadd.f32 0.0, %v2015
  %v2017 = vpop.f32.mrb[0].mxu0
  %v2018 = vadd.f32 0.0, %v2017
  %2019 = vmatprep.mubr.bf16.mxu0 %v1926
  %2020 = vmatmul.mubr.bf16.gmra.mrb[0].mxu0 %v1782
  %v2021 = vpop.f32.mrb[0].mxu0
  %v2022 = vadd.f32 0.0, %v2021
  %v2023 = vpop.f32.mrb[0].mxu0
  %v2024 = vadd.f32 0.0, %v2023
  %v2025 = vpop.f32.mrb[0].mxu0
  %v2026 = vadd.f32 0.0, %v2025
  %v2027 = vpop.f32.mrb[0].mxu0
  %v2028 = vadd.f32 0.0, %v2027
  %2029 = vmatprep.mubr.bf16.mxu0 %v1929
  %2030 = vmatmul.mubr.bf16.gmra.mrb[0].mxu0 %v1784
  %v2031 = vpop.f32.mrb[0].mxu0
  %v2032 = vadd.f32 0.0, %v2031
  %v2033 = vpop.f32.mrb[0].mxu0
  %v2034 = vadd.f32 0.0, %v2033
  %v2035 = vpop.f32.mrb[0].mxu0
  %v2036 = vadd.f32 0.0, %v2035
  %v2037 = vpop.f32.mrb[0].mxu0
  %v2038 = vadd.f32 0.0, %v2037
  %2039 = vmatprep.mubr.bf16.mxu0 %v1932
  %2040 = vmatmul.mubr.bf16.gmra.mrb[0].mxu0 %v1786
  %v2041 = vpop.f32.mrb[0].mxu0
  %v2042 = vadd.f32 0.0, %v2041
  %v2043 = vpop.f32.mrb[0].mxu0
  %v2044 = vadd.f32 0.0, %v2043
  %v2045 = vpop.f32.mrb[0].mxu0
  %v2046 = vadd.f32 0.0, %v2045
  %v2047 = vpop.f32.mrb[0].mxu0
  %v2048 = vadd.f32 0.0, %v2047
  %2049 = vmatprep.mubr.bf16.mxu0 %v1935
  %2050 = vmatmul.mubr.bf16.gmra.mrb[0].mxu0 %v1788
  %v2051 = vpop.f32.mrb[0].mxu0
  %v2052 = vadd.f32 0.0, %v2051
  %v2053 = vpop.f32.mrb[0].mxu0
  %v2054 = vadd.f32 0.0, %v2053
  %v2055 = vpop.f32.mrb[0].mxu0
  %v2056 = vadd.f32 0.0, %v2055
  %v2057 = vpop.f32.mrb[0].mxu0
  %v2058 = vadd.f32 0.0, %v2057
  %2059 = vmatprep.mubr.bf16.mxu0 %v1938
  %2060 = vmatmul.mubr.bf16.gmra.mrb[0].mxu0 %v1790
  %v2061 = vpop.f32.mrb[0].mxu0
  %v2062 = vadd.f32 0.0, %v2061
  %v2063 = vpop.f32.mrb[0].mxu0
  %v2064 = vadd.f32 0.0, %v2063
  %v2065 = vpop.f32.mrb[0].mxu0
  %v2066 = vadd.f32 0.0, %v2065
  %v2067 = vpop.f32.mrb[0].mxu0
  %v2068 = vadd.f32 0.0, %v2067
  %2069 = vmatprep.mubr.bf16.mxu0 %v1941
  %2070 = vmatmul.mubr.bf16.gmra.mrb[0].mxu0 %v1792
  %v2071 = vpop.f32.mrb[0].mxu0
  %v2072 = vadd.f32 0.0, %v2071
  %v2073 = vpop.f32.mrb[0].mxu0
  %v2074 = vadd.f32 0.0, %v2073
  %v2075 = vpop.f32.mrb[0].mxu0
  %v2076 = vadd.f32 0.0, %v2075
  %v2077 = vpop.f32.mrb[0].mxu0
  %v2078 = vadd.f32 0.0, %v2077
  %2079 = vmatprep.mubr.bf16.mxu0 %v1944
  %2080 = vmatmul.mubr.bf16.gmra.mrb[0].mxu0 %v1794
  %v2081 = vpop.f32.mrb[0].mxu0
  %v2082 = vadd.f32 0.0, %v2081
  %v2083 = vpop.f32.mrb[0].mxu0
  %v2084 = vadd.f32 0.0, %v2083
  %v2085 = vpop.f32.mrb[0].mxu0
  %v2086 = vadd.f32 0.0, %v2085
  %v2087 = vpop.f32.mrb[0].mxu0
  %v2088 = vadd.f32 0.0, %v2087
  %2089 = vmatprep.mubr.bf16.mxu0 %v1947
  %2090 = vmatmul.mubr.bf16.gmra.mrb[0].mxu0 %v1796
  %v2091 = vpop.f32.mrb[0].mxu0
  %v2092 = vadd.f32 0.0, %v2091
  %v2093 = vpop.f32.mrb[0].mxu0
  %v2094 = vadd.f32 0.0, %v2093
  %v2095 = vpop.f32.mrb[0].mxu0
  %v2096 = vadd.f32 0.0, %v2095
  %v2097 = vpop.f32.mrb[0].mxu0
  %v2098 = vadd.f32 0.0, %v2097
  %2099 = vmatprep.mubr.bf16.mxu0 %v1950
  %2100 = vmatmul.mubr.bf16.gmra.mrb[0].mxu0 %v1798
  %v2101 = vpop.f32.mrb[0].mxu0
  %v2102 = vadd.f32 0.0, %v2101
  %v2103 = vpop.f32.mrb[0].mxu0
  %v2104 = vadd.f32 0.0, %v2103
  %v2105 = vpop.f32.mrb[0].mxu0
  %v2106 = vadd.f32 0.0, %v2105
  %v2107 = vpop.f32.mrb[0].mxu0
  %v2108 = vadd.f32 0.0, %v2107
  %2109 = vmatprep.mubr.bf16.mxu0 %v1953
  %2110 = vmatmul.mubr.bf16.gmra.mrb[0].mxu0 %v1800
  %v2111 = vpop.f32.mrb[0].mxu0
  %v2112 = vadd.f32 0.0, %v2111
  %v2113 = vpop.f32.mrb[0].mxu0
  %v2114 = vadd.f32 0.0, %v2113
  %v2115 = vpop.f32.mrb[0].mxu0
  %v2116 = vadd.f32 0.0, %v2115
  %v2117 = vpop.f32.mrb[0].mxu0
  %v2118 = vadd.f32 0.0, %v2117
  %2119 = vmatprep.mubr.bf16.mxu0 %v1956
  %2120 = vmatmul.mubr.bf16.gmra.mrb[0].mxu0 %v1802
  %v2121 = vpop.f32.mrb[0].mxu0
  %v2122 = vadd.f32 0.0, %v2121
  %v2123 = vpop.f32.mrb[0].mxu0
  %v2124 = vadd.f32 0.0, %v2123
  %v2125 = vpop.f32.mrb[0].mxu0
  %v2126 = vadd.f32 0.0, %v2125
  %v2127 = vpop.f32.mrb[0].mxu0
  %v2128 = vadd.f32 0.0, %v2127
  %2129 = vmatprep.mubr.bf16.mxu0 %v1959
  %2130 = vmatmul.mubr.bf16.gmra.mrb[0].mxu0 %v1804
  %v2131 = vpop.f32.mrb[0].mxu0
  %v2132 = vadd.f32 0.0, %v2131
  %v2133 = vpop.f32.mrb[0].mxu0
  %v2134 = vadd.f32 0.0, %v2133
  %v2135 = vpop.f32.mrb[0].mxu0
  %v2136 = vadd.f32 0.0, %v2135
  %v2137 = vpop.f32.mrb[0].mxu0
  %v2138 = vadd.f32 0.0, %v2137
  %2139 = vmatprep.mubr.bf16.mxu0 %v1962
  %2140 = vmatmul.mubr.bf16.gmra.mrb[0].mxu0 %v1806
  %v2141 = vpop.f32.mrb[0].mxu0
  %v2142 = vadd.f32 0.0, %v2141
  %v2143 = vpop.f32.mrb[0].mxu0
  %v2144 = vadd.f32 0.0, %v2143
  %v2145 = vpop.f32.mrb[0].mxu0
  %v2146 = vadd.f32 0.0, %v2145
  %v2147 = vpop.f32.mrb[0].mxu0
  %v2148 = vadd.f32 0.0, %v2147
  %2149 = vmatprep.mubr.bf16.mxu0 %v1965
  %2150 = vmatmul.mubr.bf16.gmra.mrb[0].mxu0 %v1808
  %v2151 = vpop.f32.mrb[0].mxu0
  %v2152 = vadd.f32 0.0, %v2151
  %v2153 = vpop.f32.mrb[0].mxu0
  %v2154 = vadd.f32 0.0, %v2153
  %v2155 = vpop.f32.mrb[0].mxu0
  %v2156 = vadd.f32 0.0, %v2155
  %v2157 = vpop.f32.mrb[0].mxu0
  %v2158 = vadd.f32 0.0, %v2157
  %2159 = vdwg.mxu0
  %v2160 = vmax.f32 %v2002, 0.0
  %v2161 = vmax.f32 %v2004, 0.0
  %v2162 = vmax.f32 %v2006, 0.0
  %v2163 = vmax.f32 %v2008, 0.0
  %v2164 = vmax.f32 %v2012, 0.0
  %v2165 = vmax.f32 %v2014, 0.0
  %v2166 = vmax.f32 %v2016, 0.0
  %v2167 = vmax.f32 %v2018, 0.0
  %v2168 = vmax.f32 %v2022, 0.0
  %v2169 = vmax.f32 %v2024, 0.0
  %v2170 = vmax.f32 %v2026, 0.0
  %v2171 = vmax.f32 %v2028, 0.0
  %v2172 = vmax.f32 %v2032, 0.0
  %v2173 = vmax.f32 %v2034, 0.0
  %v2174 = vmax.f32 %v2036, 0.0
  %v2175 = vmax.f32 %v2038, 0.0
  %v2176 = vmax.f32 %v2042, 0.0
  %v2177 = vmax.f32 %v2044, 0.0
  %v2178 = vmax.f32 %v2046, 0.0
  %v2179 = vmax.f32 %v2048, 0.0
  %v2180 = vmax.f32 %v2052, 0.0
  %v2181 = vmax.f32 %v2054, 0.0
  %v2182 = vmax.f32 %v2056, 0.0
  %v2183 = vmax.f32 %v2058, 0.0
  %v2184 = vmax.f32 %v2062, 0.0
  %v2185 = vmax.f32 %v2064, 0.0
  %v2186 = vmax.f32 %v2066, 0.0
  %v2187 = vmax.f32 %v2068, 0.0
  %v2188 = vmax.f32 %v2072, 0.0
  %v2189 = vmax.f32 %v2074, 0.0
  %v2190 = vmax.f32 %v2076, 0.0
  %v2191 = vmax.f32 %v2078, 0.0
  %v2192 = vmax.f32 %v2082, 0.0
  %v2193 = vmax.f32 %v2084, 0.0
  %v2194 = vmax.f32 %v2086, 0.0
  %v2195 = vmax.f32 %v2088, 0.0
  %v2196 = vmax.f32 %v2092, 0.0
  %v2197 = vmax.f32 %v2094, 0.0
  %v2198 = vmax.f32 %v2096, 0.0
  %v2199 = vmax.f32 %v2098, 0.0
  %v2200 = vmax.f32 %v2102, 0.0
  %v2201 = vmax.f32 %v2104, 0.0
  %v2202 = vmax.f32 %v2106, 0.0
  %v2203 = vmax.f32 %v2108, 0.0
  %v2204 = vmax.f32 %v2112, 0.0
  %v2205 = vmax.f32 %v2114, 0.0
  %v2206 = vmax.f32 %v2116, 0.0
  %v2207 = vmax.f32 %v2118, 0.0
  %v2208 = vmax.f32 %v2122, 0.0
  %v2209 = vmax.f32 %v2124, 0.0
  %v2210 = vmax.f32 %v2126, 0.0
  %v2211 = vmax.f32 %v2128, 0.0
  %v2212 = vmax.f32 %v2132, 0.0
  %v2213 = vmax.f32 %v2134, 0.0
  %v2214 = vmax.f32 %v2136, 0.0
  %v2215 = vmax.f32 %v2138, 0.0
  %v2216 = vmax.f32 %v2142, 0.0
  %v2217 = vmax.f32 %v2144, 0.0
  %v2218 = vmax.f32 %v2146, 0.0
  %v2219 = vmax.f32 %v2148, 0.0
  %v2220 = vmax.f32 %v2152, 0.0
  %v2221 = vmax.f32 %v2154, 0.0
  %v2222 = vmax.f32 %v2156, 0.0
  %v2223 = vmax.f32 %v2158, 0.0
  %v2224 = vpack.c.bf16 %v2162, %v2160
  %v2225 = vpack.c.bf16 %v2163, %v2161
  %v2226 = vpack.c.bf16 %v2166, %v2164
  %v2227 = vpack.c.bf16 %v2167, %v2165
  %v2228 = vpack.c.bf16 %v2170, %v2168
  %v2229 = vpack.c.bf16 %v2171, %v2169
  %v2230 = vpack.c.bf16 %v2174, %v2172
  %v2231 = vpack.c.bf16 %v2175, %v2173
  %v2232 = vpack.c.bf16 %v2178, %v2176
  %v2233 = vpack.c.bf16 %v2179, %v2177
  %v2234 = vpack.c.bf16 %v2182, %v2180
  %v2235 = vpack.c.bf16 %v2183, %v2181
  %v2236 = vpack.c.bf16 %v2186, %v2184
  %v2237 = vpack.c.bf16 %v2187, %v2185
  %v2238 = vpack.c.bf16 %v2190, %v2188
  %v2239 = vpack.c.bf16 %v2191, %v2189
  %v2240 = vpack.c.bf16 %v2194, %v2192
  %v2241 = vpack.c.bf16 %v2195, %v2193
  %v2242 = vpack.c.bf16 %v2198, %v2196
  %v2243 = vpack.c.bf16 %v2199, %v2197
  %v2244 = vpack.c.bf16 %v2202, %v2200
  %v2245 = vpack.c.bf16 %v2203, %v2201
  %v2246 = vpack.c.bf16 %v2206, %v2204
  %v2247 = vpack.c.bf16 %v2207, %v2205
  %v2248 = vpack.c.bf16 %v2210, %v2208
  %v2249 = vpack.c.bf16 %v2211, %v2209
  %v2250 = vpack.c.bf16 %v2214, %v2212
  %v2251 = vpack.c.bf16 %v2215, %v2213
  %v2252 = vpack.c.bf16 %v2218, %v2216
  %v2253 = vpack.c.bf16 %v2219, %v2217
  %v2254 = vpack.c.bf16 %v2222, %v2220
  %v2255 = vpack.c.bf16 %v2223, %v2221
  %v2256 = vld [vmem:[%s5] sm:$0xf]
  %v2257 = vld [vmem:[%s5 + $0x4] sm:$0xf]
  %v2258 = vld [vmem:[%s5 + $0x8] sm:$0xf]
  %v2259 = vld [vmem:[%s5 + $0xc] sm:$0xf]
  %v2260 = vld [vmem:[%s5 + $0x10] sm:$0xf]
  %v2261 = vld [vmem:[%s5 + $0x14] sm:$0xf]
  %v2262 = vld [vmem:[%s5 + $0x18] sm:$0xf]
  %v2263 = vld [vmem:[%s5 + $0x1c] sm:$0xf]
  %v2264 = vld [vmem:[%s5 + $0x20] sm:$0xf]
  %v2265 = vld [vmem:[%s5 + $0x24] sm:$0xf]
  %v2266 = vld [vmem:[%s5 + $0x28] sm:$0xf]
  %v2267 = vld [vmem:[%s5 + $0x2c] sm:$0xf]
  %v2268 = vld [vmem:[%s5 + $0x30] sm:$0xf]
  %v2269 = vld [vmem:[%s5 + $0x34] sm:$0xf]
  %v2270 = vld [vmem:[%s5 + $0x38] sm:$0xf]
  %v2271 = vld [vmem:[%s5 + $0x3c] sm:$0xf]
  %v2272 = vld [vmem:[%s5 + $0x40] sm:$0xf]
  %v2273 = vld [vmem:[%s5 + $0x44] sm:$0xf]
  %v2292 = vunpack.c.l.b16 %v2256
  %v2293 = vunpack.c.l.b16 %v2257
  %v2294 = vunpack.c.l.b16 %v2258
  %v2295 = vunpack.c.l.b16 %v2259
  %v2296 = vunpack.c.l.b16 %v2260
  %v2297 = vunpack.c.l.b16 %v2261
  %v2298 = vunpack.c.l.b16 %v2262
  %v2299 = vunpack.c.l.b16 %v2263
  %v2300 = vunpack.c.l.b16 %v2264
  %v2301 = vunpack.c.l.b16 %v2265
  %v2302 = vunpack.c.l.b16 %v2266
  %v2303 = vunpack.c.l.b16 %v2267
  %v2304 = vunpack.c.l.b16 %v2268
  %v2305 = vunpack.c.l.b16 %v2269
  %v2306 = vunpack.c.l.b16 %v2270
  %v2307 = vunpack.c.l.b16 %v2271
  %v2308 = vunpack.c.l.b16 %v2272
  %v2309 = vunpack.c.l.b16 %v2273
  %v2310 = vpack.c.b16 %v2293, %v2292
  %v2311 = vpack.c.b16 %v2295, %v2294
  %v2312 = vpack.c.b16 %v2297, %v2296
  %v2313 = vpack.c.b16 %v2299, %v2298
  %v2314 = vpack.c.b16 %v2301, %v2300
  %v2315 = vpack.c.b16 %v2303, %v2302
  %v2316 = vpack.c.b16 %v2305, %v2304
  %v2317 = vpack.c.b16 %v2307, %v2306
  %v2318 = vpack.c.b16 %v2309, %v2308
  %v2329 = vsel %vm327, %v2225, 0
  %v2332 = vsel %vm327, %v2227, 0
  %v2335 = vsel %vm327, %v2229, 0
  %v2338 = vsel %vm327, %v2231, 0
  %v2341 = vsel %vm327, %v2233, 0
  %v2344 = vsel %vm327, %v2235, 0
  %v2347 = vsel %vm327, %v2237, 0
  %v2350 = vsel %vm327, %v2239, 0
  %v2353 = vsel %vm327, %v2241, 0
  %v2356 = vsel %vm327, %v2243, 0
  %v2359 = vsel %vm327, %v2245, 0
  %v2362 = vsel %vm327, %v2247, 0
  %v2365 = vsel %vm327, %v2249, 0
  %v2368 = vsel %vm327, %v2251, 0
  %v2371 = vsel %vm327, %v2253, 0
  %v2374 = vsel %vm327, %v2255, 0
  %2376 = vmatprep.subr.bf16.mxu0 0
  %2377 = vmatpush1.bf16.msra.mxu0 %v2310
  %2378 = vmatprep.subr.bf16.mxu0 0
  %2379 = vmatpush1.bf16.msra.mxu0 %v2311
  %2380 = vmatprep.subr.bf16.mxu0 0
  %2381 = vmatpush1.bf16.msra.mxu0 %v2312
  %2382 = vmatprep.subr.bf16.mxu0 0
  %2383 = vmatpush1.bf16.msra.mxu0 %v2313
  %2384 = vmatprep.subr.bf16.mxu0 0
  %2385 = vmatpush1.bf16.msra.mxu0 %v2314
  %2386 = vmatprep.subr.bf16.mxu0 0
  %2387 = vmatpush1.bf16.msra.mxu0 %v2315
  %2388 = vmatprep.subr.bf16.mxu0 0
  %2389 = vmatpush1.bf16.msra.mxu0 %v2316
  %2390 = vmatprep.subr.bf16.mxu0 0
  %2391 = vmatpush1.bf16.msra.mxu0 %v2317
  %2392 = vmatprep.subr.bf16.mxu0 0
  %2393 = vmatpush1.bf16.msra.mxu0 %v2318
  %2394 = vmatprep.subr.bf16.mxu0 0
  %2395 = vmatpush1.bf16.msra.mxu0 0
  %2396 = vmatprep.subr.bf16.mxu0 0
  %2397 = vmatpush1.bf16.msra.mxu0 0
  %2398 = vmatprep.subr.bf16.mxu0 0
  %2399 = vmatpush1.bf16.msra.mxu0 0
  %2400 = vmatprep.subr.bf16.mxu0 0
  %2401 = vmatpush1.bf16.msra.mxu0 0
  %2402 = vmatprep.subr.bf16.mxu0 0
  %2403 = vmatpush1.bf16.msra.mxu0 0
  %2404 = vmatprep.subr.bf16.mxu0 0
  %2405 = vmatpush1.bf16.msra.mxu0 0
  %2406 = vmatprep.subr.bf16.mxu0 0
  %2407 = vmatpush1.bf16.msra.mxu0 0
  %2408 = vmatprep.mubr.bf16.mxu0 %v2329
  %2409 = vmatmul.mubr.bf16.gmra.mrb[0].mxu0 %v2224
  %v2410 = vpop.f32.mrb[0].mxu0
  %v2411 = vadd.f32 0.0, %v2410
  %v2412 = vpop.f32.mrb[0].mxu0
  %v2413 = vpop.f32.mrb[0].mxu0
  %v2414 = vadd.f32 0.0, %v2413
  %v2415 = vpop.f32.mrb[0].mxu0
  %2416 = vmatprep.mubr.bf16.mxu0 %v2332
  %2417 = vmatmul.mubr.bf16.gmra.mrb[0].mxu0 %v2226
  %v2418 = vpop.f32.mrb[0].mxu0
  %v2419 = vadd.f32 0.0, %v2418
  %v2420 = vpop.f32.mrb[0].mxu0
  %v2421 = vpop.f32.mrb[0].mxu0
  %v2422 = vadd.f32 0.0, %v2421
  %v2423 = vpop.f32.mrb[0].mxu0
  %2424 = vmatprep.mubr.bf16.mxu0 %v2335
  %2425 = vmatmul.mubr.bf16.gmra.mrb[0].mxu0 %v2228
  %v2426 = vpop.f32.mrb[0].mxu0
  %v2427 = vadd.f32 0.0, %v2426
  %v2428 = vpop.f32.mrb[0].mxu0
  %v2429 = vpop.f32.mrb[0].mxu0
  %v2430 = vadd.f32 0.0, %v2429
  %v2431 = vpop.f32.mrb[0].mxu0
  %2432 = vmatprep.mubr.bf16.mxu0 %v2338
  %2433 = vmatmul.mubr.bf16.gmra.mrb[0].mxu0 %v2230
  %v2434 = vpop.f32.mrb[0].mxu0
  %v2435 = vadd.f32 0.0, %v2434
  %v2436 = vpop.f32.mrb[0].mxu0
  %v2437 = vpop.f32.mrb[0].mxu0
  %v2438 = vadd.f32 0.0, %v2437
  %v2439 = vpop.f32.mrb[0].mxu0
  %2440 = vmatprep.mubr.bf16.mxu0 %v2341
  %2441 = vmatmul.mubr.bf16.gmra.mrb[0].mxu0 %v2232
  %v2442 = vpop.f32.mrb[0].mxu0
  %v2443 = vadd.f32 0.0, %v2442
  %v2444 = vpop.f32.mrb[0].mxu0
  %v2445 = vpop.f32.mrb[0].mxu0
  %v2446 = vadd.f32 0.0, %v2445
  %v2447 = vpop.f32.mrb[0].mxu0
  %2448 = vmatprep.mubr.bf16.mxu0 %v2344
  %2449 = vmatmul.mubr.bf16.gmra.mrb[0].mxu0 %v2234
  %v2450 = vpop.f32.mrb[0].mxu0
  %v2451 = vadd.f32 0.0, %v2450
  %v2452 = vpop.f32.mrb[0].mxu0
  %v2453 = vpop.f32.mrb[0].mxu0
  %v2454 = vadd.f32 0.0, %v2453
  %v2455 = vpop.f32.mrb[0].mxu0
  %2456 = vmatprep.mubr.bf16.mxu0 %v2347
  %2457 = vmatmul.mubr.bf16.gmra.mrb[0].mxu0 %v2236
  %v2458 = vpop.f32.mrb[0].mxu0
  %v2459 = vadd.f32 0.0, %v2458
  %v2460 = vpop.f32.mrb[0].mxu0
  %v2461 = vpop.f32.mrb[0].mxu0
  %v2462 = vadd.f32 0.0, %v2461
  %v2463 = vpop.f32.mrb[0].mxu0
  %2464 = vmatprep.mubr.bf16.mxu0 %v2350
  %2465 = vmatmul.mubr.bf16.gmra.mrb[0].mxu0 %v2238
  %v2466 = vpop.f32.mrb[0].mxu0
  %v2467 = vadd.f32 0.0, %v2466
  %v2468 = vpop.f32.mrb[0].mxu0
  %v2469 = vpop.f32.mrb[0].mxu0
  %v2470 = vadd.f32 0.0, %v2469
  %v2471 = vpop.f32.mrb[0].mxu0
  %2472 = vmatprep.mubr.bf16.mxu0 %v2353
  %2473 = vmatmul.mubr.bf16.gmra.mrb[0].mxu0 %v2240
  %v2474 = vpop.f32.mrb[0].mxu0
  %v2475 = vadd.f32 0.0, %v2474
  %v2476 = vpop.f32.mrb[0].mxu0
  %v2477 = vpop.f32.mrb[0].mxu0
  %v2478 = vadd.f32 0.0, %v2477
  %v2479 = vpop.f32.mrb[0].mxu0
  %2480 = vmatprep.mubr.bf16.mxu0 %v2356
  %2481 = vmatmul.mubr.bf16.gmra.mrb[0].mxu0 %v2242
  %v2482 = vpop.f32.mrb[0].mxu0
  %v2483 = vadd.f32 0.0, %v2482
  %v2484 = vpop.f32.mrb[0].mxu0
  %v2485 = vpop.f32.mrb[0].mxu0
  %v2486 = vadd.f32 0.0, %v2485
  %v2487 = vpop.f32.mrb[0].mxu0
  %2488 = vmatprep.mubr.bf16.mxu0 %v2359
  %2489 = vmatmul.mubr.bf16.gmra.mrb[0].mxu0 %v2244
  %v2490 = vpop.f32.mrb[0].mxu0
  %v2491 = vadd.f32 0.0, %v2490
  %v2492 = vpop.f32.mrb[0].mxu0
  %v2493 = vpop.f32.mrb[0].mxu0
  %v2494 = vadd.f32 0.0, %v2493
  %v2495 = vpop.f32.mrb[0].mxu0
  %2496 = vmatprep.mubr.bf16.mxu0 %v2362
  %2497 = vmatmul.mubr.bf16.gmra.mrb[0].mxu0 %v2246
  %v2498 = vpop.f32.mrb[0].mxu0
  %v2499 = vadd.f32 0.0, %v2498
  %v2500 = vpop.f32.mrb[0].mxu0
  %v2501 = vpop.f32.mrb[0].mxu0
  %v2502 = vadd.f32 0.0, %v2501
  %v2503 = vpop.f32.mrb[0].mxu0
  %2504 = vmatprep.mubr.bf16.mxu0 %v2365
  %2505 = vmatmul.mubr.bf16.gmra.mrb[0].mxu0 %v2248
  %v2506 = vpop.f32.mrb[0].mxu0
  %v2507 = vadd.f32 0.0, %v2506
  %v2508 = vpop.f32.mrb[0].mxu0
  %v2509 = vpop.f32.mrb[0].mxu0
  %v2510 = vadd.f32 0.0, %v2509
  %v2511 = vpop.f32.mrb[0].mxu0
  %2512 = vmatprep.mubr.bf16.mxu0 %v2368
  %2513 = vmatmul.mubr.bf16.gmra.mrb[0].mxu0 %v2250
  %v2514 = vpop.f32.mrb[0].mxu0
  %v2515 = vadd.f32 0.0, %v2514
  %v2516 = vpop.f32.mrb[0].mxu0
  %v2517 = vpop.f32.mrb[0].mxu0
  %v2518 = vadd.f32 0.0, %v2517
  %v2519 = vpop.f32.mrb[0].mxu0
  %2520 = vmatprep.mubr.bf16.mxu0 %v2371
  %2521 = vmatmul.mubr.bf16.gmra.mrb[0].mxu0 %v2252
  %v2522 = vpop.f32.mrb[0].mxu0
  %v2523 = vadd.f32 0.0, %v2522
  %v2524 = vpop.f32.mrb[0].mxu0
  %v2525 = vpop.f32.mrb[0].mxu0
  %v2526 = vadd.f32 0.0, %v2525
  %v2527 = vpop.f32.mrb[0].mxu0
  %2528 = vmatprep.mubr.bf16.mxu0 %v2374
  %2529 = vmatmul.mubr.bf16.gmra.mrb[0].mxu0 %v2254
  %v2530 = vpop.f32.mrb[0].mxu0
  %v2531 = vadd.f32 0.0, %v2530
  %v2532 = vpop.f32.mrb[0].mxu0
  %v2533 = vpop.f32.mrb[0].mxu0
  %v2534 = vadd.f32 0.0, %v2533
  %v2535 = vpop.f32.mrb[0].mxu0
  %2536 = vdwg.mxu0
  %2537 = vst.msk [vmem:[%s6] sm:$0xff] %vm574, %v2411
  %2538 = vst.msk [vmem:[%s6 + $0x8] sm:$0xff] %vm574, %v2414
  %2539 = vst.msk [vmem:[%s6 + $0x10] sm:$0xff] %vm574, %v2419
  %2540 = vst.msk [vmem:[%s6 + $0x18] sm:$0xff] %vm574, %v2422
  %2541 = vst.msk [vmem:[%s6 + $0x20] sm:$0xff] %vm574, %v2427
  %2542 = vst.msk [vmem:[%s6 + $0x28] sm:$0xff] %vm574, %v2430
  %2543 = vst.msk [vmem:[%s6 + $0x30] sm:$0xff] %vm574, %v2435
  %2544 = vst.msk [vmem:[%s6 + $0x38] sm:$0xff] %vm574, %v2438
  %2545 = vst.msk [vmem:[%s6 + $0x40] sm:$0xff] %vm574, %v2443
  %2546 = vst.msk [vmem:[%s6 + $0x48] sm:$0xff] %vm574, %v2446
  %2547 = vst.msk [vmem:[%s6 + $0x50] sm:$0xff] %vm574, %v2451
  %2548 = vst.msk [vmem:[%s6 + $0x58] sm:$0xff] %vm574, %v2454
  %2549 = vst.msk [vmem:[%s6 + $0x60] sm:$0xff] %vm574, %v2459
  %2550 = vst.msk [vmem:[%s6 + $0x68] sm:$0xff] %vm574, %v2462
  %2551 = vst.msk [vmem:[%s6 + $0x70] sm:$0xff] %vm574, %v2467
  %2552 = vst.msk [vmem:[%s6 + $0x78] sm:$0xff] %vm574, %v2470
  %2553 = vst.msk [vmem:[%s6 + $0x80] sm:$0xff] %vm574, %v2475
  %2554 = vst.msk [vmem:[%s6 + $0x88] sm:$0xff] %vm574, %v2478
  %2555 = vst.msk [vmem:[%s6 + $0x90] sm:$0xff] %vm574, %v2483
  %2556 = vst.msk [vmem:[%s6 + $0x98] sm:$0xff] %vm574, %v2486
  %2557 = vst.msk [vmem:[%s6 + $0xa0] sm:$0xff] %vm574, %v2491
  %2558 = vst.msk [vmem:[%s6 + $0xa8] sm:$0xff] %vm574, %v2494
  %2559 = vst.msk [vmem:[%s6 + $0xb0] sm:$0xff] %vm574, %v2499
  %2560 = vst.msk [vmem:[%s6 + $0xb8] sm:$0xff] %vm574, %v2502
  %2561 = vst.msk [vmem:[%s6 + $0xc0] sm:$0xff] %vm574, %v2507
  %2562 = vst.msk [vmem:[%s6 + $0xc8] sm:$0xff] %vm574, %v2510
  %2563 = vst.msk [vmem:[%s6 + $0xd0] sm:$0xff] %vm574, %v2515
  %2564 = vst.msk [vmem:[%s6 + $0xd8] sm:$0xff] %vm574, %v2518
  %2565 = vst.msk [vmem:[%s6 + $0xe0] sm:$0xff] %vm574, %v2523
  %2566 = vst.msk [vmem:[%s6 + $0xe8] sm:$0xff] %vm574, %v2526
  %2567 = vst.msk [vmem:[%s6 + $0xf0] sm:$0xff] %vm574, %v2531
  %2568 = vst.msk [vmem:[%s6 + $0xf8] sm:$0xff] %vm574, %v2534
  // Predicated region
  $region26: #{_forward_jit.1} parent=0 // pred_check
    _
  $region27: #{_forward_jit.1} parent=0 // pred_check_branch
    %2570 = sbr.rel (0) target = $region29
  $region28: #{_forward_jit.1} parent=0 // pred_region
    _
  $region29: #{_forward_jit.1} parent=0 // pred_fallthru
    _
  // Predicated region
  $region30: #{_forward_jit.1} parent=0 // pred_check
    _
  $region31: #{_forward_jit.1} parent=0 // pred_check_branch
    %2572 = sbr.rel (0) target = $region33
  $region32: #{_forward_jit.1} parent=0 // pred_region
    _
  $region33: #{_forward_jit.1} parent=0 // pred_fallthru
    _

</llo_original>
